<compile_context>
chip_gen: v7x
topology: tpu7x:2x2x1
jax: 0.10.0
libtpu: 0.0.40
codegen_flags: <defaults>
</compile_context>

<pallas_src>
import functools

import jax
import jax.numpy as jnp
import numpy as np
from jax.experimental import pallas as pl
from jax.experimental.pallas import tpu as pltpu


# ----------------------------------------------------------------------------
# Pallas kernel: fused 3-scale (permutation-folded SGS) matmul + residual add
# ----------------------------------------------------------------------------
def _git_kernel(xr3_ref, xg3_ref, xr4_ref, xg4_ref, xr5_ref, xg5_ref,
                wr3_ref, wg3_ref, wr4_ref, wg4_ref, wr5_ref, wg5_ref,
                o3_ref, o4_ref, o5_ref):
    def one_scale(xr_ref, xg_ref, wr_ref, wg_ref, o_ref):
        xr = xr_ref[...]                                    # (Cr, HW)
        acc = jnp.dot(wr_ref[...], xr,                      # (Cout, HW)
                      preferred_element_type=jnp.float32)
        acc = acc + jnp.dot(wg_ref[...], xg_ref[...],
                            preferred_element_type=jnp.float32)
        o_ref[...] = (xr + acc).astype(o_ref.dtype)

    one_scale(xr3_ref, xg3_ref, wr3_ref, wg3_ref, o3_ref)
    one_scale(xr4_ref, xg4_ref, wr4_ref, wg4_ref, o4_ref)
    one_scale(xr5_ref, xg5_ref, wr5_ref, wg5_ref, o5_ref)


@jax.jit
def gradient_induced_transition_fwd(xr3, xr4, xr5, xg3, xg2, xg4, wts):
    """zt_s = xr_s + WrT_s @ xr_s + WgT_s @ xg_s  (NCHW-native, one call)."""
    B, Cr, H3, W3 = xr3.shape
    Cg = xg3.shape[1]
    Cout = Cr
    hw3 = H3 * W3
    hw4 = xr4.shape[2] * xr4.shape[3]
    hw5 = xr5.shape[2] * xr5.shape[3]

    def flat(x):
        b, c, h, w = x.shape
        return x.reshape(b, c, h * w)          # free (contiguity preserving)

    xr3f, xr4f, xr5f = flat(xr3), flat(xr4), flat(xr5)
    xg3f, xg2f, xg4f = flat(xg3), flat(xg2), flat(xg4)

    def act_spec(c, hw):
        # leading batch dim squeezed away; block = whole per-image slab
        return pl.BlockSpec((None, c, hw), lambda b: (b, 0, 0))

    def w_spec(co, ci):
        return pl.BlockSpec((co, ci), lambda b: (0, 0))

    flops = 2 * B * (Cr + Cg) * Cout * (hw3 + hw4 + hw5)
    bytes_accessed = 4 * (
        B * (Cr + Cg) * (hw3 + hw4 + hw5)       # xr + xg streams
        + B * Cout * (hw3 + hw4 + hw5)          # outputs
        + 3 * (Cr + Cg) * Cout)                 # weights

    out3f, out4f, out5f = pl.pallas_call(
        _git_kernel,
        out_shape=(
            jax.ShapeDtypeStruct((B, Cout, hw3), xr3.dtype),
            jax.ShapeDtypeStruct((B, Cout, hw4), xr4.dtype),
            jax.ShapeDtypeStruct((B, Cout, hw5), xr5.dtype),
        ),
        grid_spec=pltpu.PrefetchScalarGridSpec(
            num_scalar_prefetch=0,
            grid=(B,),
            in_specs=[
                act_spec(Cr, hw3), act_spec(Cg, hw3),
                act_spec(Cr, hw4), act_spec(Cg, hw4),
                act_spec(Cr, hw5), act_spec(Cg, hw5),
                w_spec(Cout, Cr), w_spec(Cout, Cg),
                w_spec(Cout, Cr), w_spec(Cout, Cg),
                w_spec(Cout, Cr), w_spec(Cout, Cg),
            ],
            out_specs=(
                act_spec(Cout, hw3),
                act_spec(Cout, hw4),
                act_spec(Cout, hw5),
            ),
        ),
        compiler_params=pltpu.CompilerParams(
            dimension_semantics=("parallel",)),
        cost_estimate=pl.CostEstimate(
            flops=flops, transcendentals=0, bytes_accessed=bytes_accessed),
    )(xr3f, xg3f, xr4f, xg2f, xr5f, xg4f,
      wts[0][0], wts[0][1], wts[1][0], wts[1][1], wts[2][0], wts[2][1])

    zt3 = out3f.reshape(xr3.shape)
    zt4 = out4f.reshape(xr4.shape)
    zt5 = out5f.reshape(xr5.shape)
    return zt3, zt4, zt5


# ----------------------------------------------------------------------------
# Plain-JAX parameter setup / data prep (mirrors the PyTorch semantics)
# ----------------------------------------------------------------------------
def grouped_weight_to_dense(w, groups):
    """Grouped 1x1 conv weight (Cout, Cin//g, 1, 1) -> dense (Cin, Cout)."""
    Cout, cin_pg = w.shape[0], w.shape[1]
    Cin = cin_pg * groups
    cout_pg = Cout // groups
    W = jnp.zeros((Cin, Cout), dtype=w.dtype)
    w2 = w[:, :, 0, 0]  # (Cout, Cin//g)
    for g in range(groups):
        blk = w2[g * cout_pg:(g + 1) * cout_pg, :]            # (cout_pg, cin_pg)
        W = W.at[g * cin_pg:(g + 1) * cin_pg,
                 g * cout_pg:(g + 1) * cout_pg].set(blk.T)
    return W


def interleave_row_permutation(Cr, Cg, M):
    """Row indices of W_dense (q-channel order) belonging to xr / xg channels."""
    crm, cgm = Cr // M, Cg // M
    r_rows = np.zeros(Cr, dtype=np.int32)
    g_rows = np.zeros(Cg, dtype=np.int32)
    for m in range(M):
        base = m * (crm + cgm)
        for j in range(crm):
            r_rows[m * crm + j] = base + j
        for j in range(cgm):
            g_rows[m * cgm + j] = base + crm + j
    return r_rows, g_rows


def gradient_induced_feature_grouping(xr, xg, M):
    """Channel interleave (used only by the plain-JAX reference check)."""
    B, Cr, H, W = xr.shape
    Cg = xg.shape[1]
    assert Cr % M == 0 and Cg % M == 0
    xr_c = xr.reshape(B, M, Cr // M, H, W)
    xg_c = xg.reshape(B, M, Cg // M, H, W)
    q = jnp.concatenate([xr_c, xg_c], axis=2)
    return q.reshape(B, Cr + Cg, H, W)


def _resize_axis_align_corners(x, out_size, axis):
    in_size = x.shape[axis]
    if out_size == in_size:
        return x
    if out_size == 1:
        pos = jnp.zeros((1,), jnp.float32)
    else:
        pos = jnp.arange(out_size, dtype=jnp.float32) * (in_size - 1) / (out_size - 1)
    lo = jnp.floor(pos).astype(jnp.int32)
    hi = jnp.minimum(lo + 1, in_size - 1)
    frac = pos - lo.astype(jnp.float32)
    xlo = jnp.take(x, lo, axis=axis)
    xhi = jnp.take(x, hi, axis=axis)
    shp = [1] * x.ndim
    shp[axis] = out_size
    frac = frac.reshape(shp)
    return xlo * (1.0 - frac) + xhi * frac


def bilinear_downsample_align_corners(x, scale):
    """nn.Upsample(scale_factor=scale, mode='bilinear', align_corners=True)."""
    # TODO(synk): data-prep resize left in plain JAX (gather/lerp), not Pallas.
    B, C, H, W = x.shape
    out_h = int(H * scale)
    out_w = int(W * scale)
    x = _resize_axis_align_corners(x, out_h, axis=2)
    x = _resize_axis_align_corners(x, out_w, axis=3)
    return x


# ----------------------------------------------------------------------------
# Module: GradientInducedTransition
# ----------------------------------------------------------------------------
class GradientInducedTransition:
    def __init__(self, channel, M, N, key):
        self.M = M
        self.N = N
        self.channel = channel
        cin = channel + 32
        cout = channel
        keys = jax.random.split(key, 9)
        self.weights = []  # weights[scale][conv] : (Cout, Cin//g, 1, 1)
        k = 0
        for _scale in range(3):
            ws = []
            for g in N:
                w = 0.05 * jax.random.normal(
                    keys[k], (cout, cin // g, 1, 1), dtype=jnp.float32)
                ws.append(w)
                k += 1
            self.weights.append(ws)
        # Fold the three grouped convs per scale into one dense (Cin, Cout)
        # matrix, then fold the channel-interleave permutation into it so the
        # interleaved tensor q never has to be built:
        #   zt = xr + q @ W_dense == xr + xr @ W_r + xg @ W_g
        w_dense = [
            functools.reduce(
                jnp.add,
                [grouped_weight_to_dense(w, g) for w, g in zip(ws, N)])
            for ws in self.weights
        ]
        self.wt = []
        for s in range(3):
            r_rows, g_rows = interleave_row_permutation(channel, 32, M[s])
            W_r = w_dense[s][r_rows, :]   # (Cr, Cout)
            W_g = w_dense[s][g_rows, :]   # (Cg, Cout)
            # Stored transposed for the NCHW-native kernel (out = W.T @ x).
            self.wt.append((jnp.asarray(W_r.T), jnp.asarray(W_g.T)))

    def __call__(self, xr3, xr4, xr5, xg):
        xg2 = bilinear_downsample_align_corners(xg, 0.5)
        xg4 = bilinear_downsample_align_corners(xg, 0.25)
        return gradient_induced_transition_fwd(
            xr3, xr4, xr5, xg, xg2, xg4, self.wt)


# ----------------------------------------------------------------------------
# Pure-JAX reference (grouped convs via lax.conv) for a correctness check
# ----------------------------------------------------------------------------
def _ref_sgs(q, ws, Ns):
    out = jnp.zeros((q.shape[0], ws[0].shape[0], q.shape[2], q.shape[3]),
                    dtype=jnp.float32)
    for w, g in zip(ws, Ns):
        out = out + jax.lax.conv_general_dilated(
            q, w, window_strides=(1, 1), padding="VALID",
            dimension_numbers=("NCHW", "OIHW", "NCHW"),
            feature_group_count=g)
    return out


if __name__ == "__main__":
    key = jax.random.PRNGKey(0)
    k_xr3, k_xr4, k_xr5, k_xg, k_w = jax.random.split(key, 5)

    channel = 32          # xg is always 32 channels (channel + 32 conv input)
    M = (4, 2, 1)
    N = (2, 4, 8)
    B, H = 2, 16

    xr3 = jax.random.normal(k_xr3, (B, channel, H, H), dtype=jnp.float32)
    xr4 = jax.random.normal(k_xr4, (B, channel, H // 2, H // 2), dtype=jnp.float32)
    xr5 = jax.random.normal(k_xr5, (B, channel, H // 4, H // 4), dtype=jnp.float32)
    xg = jax.random.normal(k_xg, (B, 32, H, H), dtype=jnp.float32)

    git = GradientInducedTransition(channel, M, N, k_w)
    zt3, zt4, zt5 = git(xr3, xr4, xr5, xg)
    jax.block_until_ready((zt3, zt4, zt5))

    # cross-check against a plain-JAX grouped-conv reference (PyTorch semantics)
    xg2 = bilinear_downsample_align_corners(xg, 0.5)
    xg4 = bilinear_downsample_align_corners(xg, 0.25)
    q3 = gradient_induced_feature_grouping(xr3, xg, M[0])
    q4 = gradient_induced_feature_grouping(xr4, xg2, M[1])
    q5 = gradient_induced_feature_grouping(xr5, xg4, M[2])
    ref3 = xr3 + _ref_sgs(q3, git.weights[0], N)
    ref4 = xr4 + _ref_sgs(q4, git.weights[1], N)
    ref5 = xr5 + _ref_sgs(q5, git.weights[2], N)

    np.testing.assert_allclose(np.asarray(zt3), np.asarray(ref3), atol=1e-4, rtol=1e-4)
    np.testing.assert_allclose(np.asarray(zt4), np.asarray(ref4), atol=1e-4, rtol=1e-4)
    np.testing.assert_allclose(np.asarray(zt5), np.asarray(ref5), atol=1e-4, rtol=1e-4)

    print("KERNEL_OK")
</pallas_src>

<mosaic_0001>
module attributes {stable_mosaic.version = 11 : i64} {
  func.func @_git_kernel(%arg0: i32, %arg1: memref<1x32x256xf32, #tpu.memory_space<vmem>>, %arg2: memref<1x32x256xf32, #tpu.memory_space<vmem>>, %arg3: memref<1x32x64xf32, #tpu.memory_space<vmem>>, %arg4: memref<1x32x64xf32, #tpu.memory_space<vmem>>, %arg5: memref<1x32x16xf32, #tpu.memory_space<vmem>>, %arg6: memref<1x32x16xf32, #tpu.memory_space<vmem>>, %arg7: memref<32x32xf32, #tpu.memory_space<vmem>>, %arg8: memref<32x32xf32, #tpu.memory_space<vmem>>, %arg9: memref<32x32xf32, #tpu.memory_space<vmem>>, %arg10: memref<32x32xf32, #tpu.memory_space<vmem>>, %arg11: memref<32x32xf32, #tpu.memory_space<vmem>>, %arg12: memref<32x32xf32, #tpu.memory_space<vmem>>, %arg13: memref<1x32x256xf32, #tpu.memory_space<vmem>>, %arg14: memref<1x32x64xf32, #tpu.memory_space<vmem>>, %arg15: memref<1x32x16xf32, #tpu.memory_space<vmem>>) attributes {dimension_semantics = [#tpu.dimension_semantics<parallel>], iteration_bounds = array<i64: 2>, scalar_prefetch = 0 : i64, scratch_operands = 0 : i64, tpu.core_type = #tpu.core_type<tc>, window_params = [{transform_indices = @transform_0, window_bounds = array<i64: 1, 32, 256>}, {transform_indices = @transform_1, window_bounds = array<i64: 1, 32, 256>}, {transform_indices = @transform_2, window_bounds = array<i64: 1, 32, 64>}, {transform_indices = @transform_3, window_bounds = array<i64: 1, 32, 64>}, {transform_indices = @transform_4, window_bounds = array<i64: 1, 32, 16>}, {transform_indices = @transform_5, window_bounds = array<i64: 1, 32, 16>}, {pipeline_mode = #tpu.pipeline_mode<synchronous>, transform_indices = @transform_6, window_bounds = array<i64: 32, 32>}, {pipeline_mode = #tpu.pipeline_mode<synchronous>, transform_indices = @transform_7, window_bounds = array<i64: 32, 32>}, {pipeline_mode = #tpu.pipeline_mode<synchronous>, transform_indices = @transform_8, window_bounds = array<i64: 32, 32>}, {pipeline_mode = #tpu.pipeline_mode<synchronous>, transform_indices = @transform_9, window_bounds = array<i64: 32, 32>}, {pipeline_mode = #tpu.pipeline_mode<synchronous>, transform_indices = @transform_10, window_bounds = array<i64: 32, 32>}, {pipeline_mode = #tpu.pipeline_mode<synchronous>, transform_indices = @transform_11, window_bounds = array<i64: 32, 32>}, {transform_indices = @transform_12, window_bounds = array<i64: 1, 32, 256>}, {transform_indices = @transform_13, window_bounds = array<i64: 1, 32, 64>}, {transform_indices = @transform_14, window_bounds = array<i64: 1, 32, 16>}]} {
    %c0 = arith.constant 0 : index
    %c0_0 = arith.constant 0 : index
    %c0_1 = arith.constant 0 : index
    %0 = vector.load %arg1[%c0, %c0_0, %c0_1] : memref<1x32x256xf32, #tpu.memory_space<vmem>>, vector<1x32x256xf32>
    %1 = vector.shape_cast %0 : vector<1x32x256xf32> to vector<32x256xf32>
    %c0_2 = arith.constant 0 : index
    %c0_3 = arith.constant 0 : index
    %2 = vector.load %arg7[%c0_2, %c0_3] : memref<32x32xf32, #tpu.memory_space<vmem>>, vector<32x32xf32>
    %cst = arith.constant dense<0.000000e+00> : vector<32x256xf32>
    %3 = tpu.matmul %2, %1, %cst {dimension_numbers = #tpu.dot_dimension_numbers<[1], [0], [0], [1], [0, 0, 1, 1], [], []>} : vector<32x32xf32>, vector<32x256xf32>, vector<32x256xf32> -> vector<32x256xf32>
    %c0_4 = arith.constant 0 : index
    %c0_5 = arith.constant 0 : index
    %4 = vector.load %arg8[%c0_4, %c0_5] : memref<32x32xf32, #tpu.memory_space<vmem>>, vector<32x32xf32>
    %c0_6 = arith.constant 0 : index
    %c0_7 = arith.constant 0 : index
    %c0_8 = arith.constant 0 : index
    %5 = vector.load %arg2[%c0_6, %c0_7, %c0_8] : memref<1x32x256xf32, #tpu.memory_space<vmem>>, vector<1x32x256xf32>
    %6 = vector.shape_cast %5 : vector<1x32x256xf32> to vector<32x256xf32>
    %cst_9 = arith.constant dense<0.000000e+00> : vector<32x256xf32>
    %7 = tpu.matmul %4, %6, %cst_9 {dimension_numbers = #tpu.dot_dimension_numbers<[1], [0], [0], [1], [0, 0, 1, 1], [], []>} : vector<32x32xf32>, vector<32x256xf32>, vector<32x256xf32> -> vector<32x256xf32>
    %8 = arith.addf %3, %7 : vector<32x256xf32>
    %9 = arith.addf %1, %8 : vector<32x256xf32>
    %c0_10 = arith.constant 0 : index
    %c0_11 = arith.constant 0 : index
    %c0_12 = arith.constant 0 : index
    %10 = vector.load %arg13[%c0_10, %c0_11, %c0_12] : memref<1x32x256xf32, #tpu.memory_space<vmem>>, vector<1x32x256xf32>
    %11 = vector.shape_cast %10 : vector<1x32x256xf32> to vector<32x256xf32>
    %12 = vector.shape_cast %9 : vector<32x256xf32> to vector<1x32x256xf32>
    tpu.vector_store %arg13[%c0_10, %c0_11, %c0_12], %12 {strides = array<i32>} : memref<1x32x256xf32, #tpu.memory_space<vmem>>, vector<1x32x256xf32>,
    %c0_13 = arith.constant 0 : index
    %c0_14 = arith.constant 0 : index
    %c0_15 = arith.constant 0 : index
    %13 = vector.load %arg3[%c0_13, %c0_14, %c0_15] : memref<1x32x64xf32, #tpu.memory_space<vmem>>, vector<1x32x64xf32>
    %14 = vector.shape_cast %13 : vector<1x32x64xf32> to vector<32x64xf32>
    %c0_16 = arith.constant 0 : index
    %c0_17 = arith.constant 0 : index
    %15 = vector.load %arg9[%c0_16, %c0_17] : memref<32x32xf32, #tpu.memory_space<vmem>>, vector<32x32xf32>
    %cst_18 = arith.constant dense<0.000000e+00> : vector<32x64xf32>
    %16 = tpu.matmul %15, %14, %cst_18 {dimension_numbers = #tpu.dot_dimension_numbers<[1], [0], [0], [1], [0, 0, 1, 1], [], []>} : vector<32x32xf32>, vector<32x64xf32>, vector<32x64xf32> -> vector<32x64xf32>
    %c0_19 = arith.constant 0 : index
    %c0_20 = arith.constant 0 : index
    %17 = vector.load %arg10[%c0_19, %c0_20] : memref<32x32xf32, #tpu.memory_space<vmem>>, vector<32x32xf32>
    %c0_21 = arith.constant 0 : index
    %c0_22 = arith.constant 0 : index
    %c0_23 = arith.constant 0 : index
    %18 = vector.load %arg4[%c0_21, %c0_22, %c0_23] : memref<1x32x64xf32, #tpu.memory_space<vmem>>, vector<1x32x64xf32>
    %19 = vector.shape_cast %18 : vector<1x32x64xf32> to vector<32x64xf32>
    %cst_24 = arith.constant dense<0.000000e+00> : vector<32x64xf32>
    %20 = tpu.matmul %17, %19, %cst_24 {dimension_numbers = #tpu.dot_dimension_numbers<[1], [0], [0], [1], [0, 0, 1, 1], [], []>} : vector<32x32xf32>, vector<32x64xf32>, vector<32x64xf32> -> vector<32x64xf32>
    %21 = arith.addf %16, %20 : vector<32x64xf32>
    %22 = arith.addf %14, %21 : vector<32x64xf32>
    %c0_25 = arith.constant 0 : index
    %c0_26 = arith.constant 0 : index
    %c0_27 = arith.constant 0 : index
    %23 = vector.load %arg14[%c0_25, %c0_26, %c0_27] : memref<1x32x64xf32, #tpu.memory_space<vmem>>, vector<1x32x64xf32>
    %24 = vector.shape_cast %23 : vector<1x32x64xf32> to vector<32x64xf32>
    %25 = vector.shape_cast %22 : vector<32x64xf32> to vector<1x32x64xf32>
    tpu.vector_store %arg14[%c0_25, %c0_26, %c0_27], %25 {strides = array<i32>} : memref<1x32x64xf32, #tpu.memory_space<vmem>>, vector<1x32x64xf32>,
    %c0_28 = arith.constant 0 : index
    %c0_29 = arith.constant 0 : index
    %c0_30 = arith.constant 0 : index
    %26 = vector.load %arg5[%c0_28, %c0_29, %c0_30] : memref<1x32x16xf32, #tpu.memory_space<vmem>>, vector<1x32x16xf32>
    %27 = vector.shape_cast %26 : vector<1x32x16xf32> to vector<32x16xf32>
    %c0_31 = arith.constant 0 : index
    %c0_32 = arith.constant 0 : index
    %28 = vector.load %arg11[%c0_31, %c0_32] : memref<32x32xf32, #tpu.memory_space<vmem>>, vector<32x32xf32>
    %cst_33 = arith.constant dense<0.000000e+00> : vector<32x16xf32>
    %29 = tpu.matmul %28, %27, %cst_33 {dimension_numbers = #tpu.dot_dimension_numbers<[1], [0], [0], [1], [0, 0, 1, 1], [], []>} : vector<32x32xf32>, vector<32x16xf32>, vector<32x16xf32> -> vector<32x16xf32>
    %c0_34 = arith.constant 0 : index
    %c0_35 = arith.constant 0 : index
    %30 = vector.load %arg12[%c0_34, %c0_35] : memref<32x32xf32, #tpu.memory_space<vmem>>, vector<32x32xf32>
    %c0_36 = arith.constant 0 : index
    %c0_37 = arith.constant 0 : index
    %c0_38 = arith.constant 0 : index
    %31 = vector.load %arg6[%c0_36, %c0_37, %c0_38] : memref<1x32x16xf32, #tpu.memory_space<vmem>>, vector<1x32x16xf32>
    %32 = vector.shape_cast %31 : vector<1x32x16xf32> to vector<32x16xf32>
    %cst_39 = arith.constant dense<0.000000e+00> : vector<32x16xf32>
    %33 = tpu.matmul %30, %32, %cst_39 {dimension_numbers = #tpu.dot_dimension_numbers<[1], [0], [0], [1], [0, 0, 1, 1], [], []>} : vector<32x32xf32>, vector<32x16xf32>, vector<32x16xf32> -> vector<32x16xf32>
    %34 = arith.addf %29, %33 : vector<32x16xf32>
    %35 = arith.addf %27, %34 : vector<32x16xf32>
    %c0_40 = arith.constant 0 : index
    %c0_41 = arith.constant 0 : index
    %c0_42 = arith.constant 0 : index
    %36 = vector.load %arg15[%c0_40, %c0_41, %c0_42] : memref<1x32x16xf32, #tpu.memory_space<vmem>>, vector<1x32x16xf32>
    %37 = vector.shape_cast %36 : vector<1x32x16xf32> to vector<32x16xf32>
    %38 = vector.shape_cast %35 : vector<32x16xf32> to vector<1x32x16xf32>
    tpu.vector_store %arg15[%c0_40, %c0_41, %c0_42], %38 {strides = array<i32>} : memref<1x32x16xf32, #tpu.memory_space<vmem>>, vector<1x32x16xf32>,
    return
  }
  func.func @transform_0(%arg0: i32) -> (i32, i32, i32) {
    %c0_i32 = arith.constant 0 : i32
    %c0_i32_0 = arith.constant 0 : i32
    %c0_i32_1 = arith.constant 0 : i32
    return %arg0, %c0_i32, %c0_i32_0 : i32, i32, i32
  }
  func.func @transform_1(%arg0: i32) -> (i32, i32, i32) {
    %c0_i32 = arith.constant 0 : i32
    %c0_i32_0 = arith.constant 0 : i32
    %c0_i32_1 = arith.constant 0 : i32
    return %arg0, %c0_i32, %c0_i32_0 : i32, i32, i32
  }
  func.func @transform_2(%arg0: i32) -> (i32, i32, i32) {
    %c0_i32 = arith.constant 0 : i32
    %c0_i32_0 = arith.constant 0 : i32
    %c0_i32_1 = arith.constant 0 : i32
    return %arg0, %c0_i32, %c0_i32_0 : i32, i32, i32
  }
  func.func @transform_3(%arg0: i32) -> (i32, i32, i32) {
    %c0_i32 = arith.constant 0 : i32
    %c0_i32_0 = arith.constant 0 : i32
    %c0_i32_1 = arith.constant 0 : i32
    return %arg0, %c0_i32, %c0_i32_0 : i32, i32, i32
  }
  func.func @transform_4(%arg0: i32) -> (i32, i32, i32) {
    %c0_i32 = arith.constant 0 : i32
    %c0_i32_0 = arith.constant 0 : i32
    %c0_i32_1 = arith.constant 0 : i32
    return %arg0, %c0_i32, %c0_i32_0 : i32, i32, i32
  }
  func.func @transform_5(%arg0: i32) -> (i32, i32, i32) {
    %c0_i32 = arith.constant 0 : i32
    %c0_i32_0 = arith.constant 0 : i32
    %c0_i32_1 = arith.constant 0 : i32
    return %arg0, %c0_i32, %c0_i32_0 : i32, i32, i32
  }
  func.func @transform_6(%arg0: i32) -> (i32, i32) {
    %c0_i32 = arith.constant 0 : i32
    %c0_i32_0 = arith.constant 0 : i32
    %c0_i32_1 = arith.constant 0 : i32
    return %c0_i32, %c0_i32_0 : i32, i32
  }
  func.func @transform_7(%arg0: i32) -> (i32, i32) {
    %c0_i32 = arith.constant 0 : i32
    %c0_i32_0 = arith.constant 0 : i32
    %c0_i32_1 = arith.constant 0 : i32
    return %c0_i32, %c0_i32_0 : i32, i32
  }
  func.func @transform_8(%arg0: i32) -> (i32, i32) {
    %c0_i32 = arith.constant 0 : i32
    %c0_i32_0 = arith.constant 0 : i32
    %c0_i32_1 = arith.constant 0 : i32
    return %c0_i32, %c0_i32_0 : i32, i32
  }
  func.func @transform_9(%arg0: i32) -> (i32, i32) {
    %c0_i32 = arith.constant 0 : i32
    %c0_i32_0 = arith.constant 0 : i32
    %c0_i32_1 = arith.constant 0 : i32
    return %c0_i32, %c0_i32_0 : i32, i32
  }
  func.func @transform_10(%arg0: i32) -> (i32, i32) {
    %c0_i32 = arith.constant 0 : i32
    %c0_i32_0 = arith.constant 0 : i32
    %c0_i32_1 = arith.constant 0 : i32
    return %c0_i32, %c0_i32_0 : i32, i32
  }
  func.func @transform_11(%arg0: i32) -> (i32, i32) {
    %c0_i32 = arith.constant 0 : i32
    %c0_i32_0 = arith.constant 0 : i32
    %c0_i32_1 = arith.constant 0 : i32
    return %c0_i32, %c0_i32_0 : i32, i32
  }
  func.func @transform_12(%arg0: i32) -> (i32, i32, i32) {
    %c0_i32 = arith.constant 0 : i32
    %c0_i32_0 = arith.constant 0 : i32
    %c0_i32_1 = arith.constant 0 : i32
    return %arg0, %c0_i32, %c0_i32_0 : i32, i32, i32
  }
  func.func @transform_13(%arg0: i32) -> (i32, i32, i32) {
    %c0_i32 = arith.constant 0 : i32
    %c0_i32_0 = arith.constant 0 : i32
    %c0_i32_1 = arith.constant 0 : i32
    return %arg0, %c0_i32, %c0_i32_0 : i32, i32, i32
  }
  func.func @transform_14(%arg0: i32) -> (i32, i32, i32) {
    %c0_i32 = arith.constant 0 : i32
    %c0_i32_0 = arith.constant 0 : i32
    %c0_i32_1 = arith.constant 0 : i32
    return %arg0, %c0_i32, %c0_i32_0 : i32, i32, i32
  }
}

</mosaic_0001>

<llo_original>
// kernel: gradient_induced_transition_fwd.1
$region0: #{gradient_induced_transition_fwd.1}
  #allocation0 [shape = 'u32[]', space=smem, size = 0x4, offset = 0x4, fixed_abs, tag = 'smem constant byte address 0x4 - core index']
  #allocation1 [shape = 'u32[144,128]{1,0:T(1,128)}', space=vmem, size = 0x12000, scoped, tag = 'internal scratch']
  %s0 = inlined_call_operand.vmem [shape: f32[2,32,256], index: 0, kind: input, shape index: {}]
  %s1 = inlined_call_operand.vmem [shape: f32[2,32,256], index: 1, kind: input, shape index: {}]
  %s2 = inlined_call_operand.vmem [shape: f32[2,32,64], index: 2, kind: input, shape index: {}]
  %s3 = inlined_call_operand.vmem [shape: f32[2,32,64], index: 3, kind: input, shape index: {}]
  %s4 = inlined_call_operand.vmem [shape: f32[2,32,16], index: 4, kind: input, shape index: {}]
  %s5 = inlined_call_operand.vmem [shape: f32[2,32,16], index: 5, kind: input, shape index: {}]
  %s6 = inlined_call_operand.vmem [shape: f32[32,32], index: 6, kind: input, shape index: {}]
  %s7 = inlined_call_operand.vmem [shape: f32[32,32], index: 7, kind: input, shape index: {}]
  %s8 = inlined_call_operand.vmem [shape: f32[32,32], index: 8, kind: input, shape index: {}]
  %s9 = inlined_call_operand.vmem [shape: f32[32,32], index: 9, kind: input, shape index: {}]
  %s10 = inlined_call_operand.vmem [shape: f32[32,32], index: 10, kind: input, shape index: {}]
  %s11 = inlined_call_operand.vmem [shape: f32[32,32], index: 11, kind: input, shape index: {}]
  %s12 = inlined_call_operand.vmem [shape: f32[2,32,256], index: 12, kind: output, shape index: {0}]
  %s13 = inlined_call_operand.vmem [shape: f32[2,32,64], index: 13, kind: output, shape index: {1}]
  %s14 = inlined_call_operand.vmem [shape: f32[2,32,16], index: 14, kind: output, shape index: {2}]
  %15 = xla_tuple %s12, %s13, %s14
  %s16 = sld [smem:[#allocation0]]
  $region97: #{gradient_induced_transition_fwd.1} parent=0
    _
  %s18 = ssub.s32 1, %s16
  %s19 = scalar_select 0, %s18, %s16
  loop: start=0, step=1, limit=4
  $region2: #{gradient_induced_transition_fwd.1} parent=0 // loop_pre_header
    _
  $region3: #{gradient_induced_transition_fwd.1} parent=0 // loop_header
    %s21 = sphi 0, %s25
    %p22 = scmp.ge.s32.totalorder %s21, 4
    %s31 = sphi 0, %s33
    %s34 = sphi 0, %s31
    %s35 = sphi 0, %s34
    %s51 = sphi 0, %s35
    %s57 = sphi 0, %s59
    %s60 = sphi 0, %s57
    %s61 = sphi 0, %s60
    %s77 = sphi 0, %s61
    %s83 = sphi 0, %s85
    %s86 = sphi 0, %s83
    %s87 = sphi 0, %s86
    %s103 = sphi 0, %s87
    %s109 = sphi 0, %s111
    %s112 = sphi 0, %s109
    %s113 = sphi 0, %s112
    %s129 = sphi 0, %s113
    %s135 = sphi 0, %s137
    %s138 = sphi 0, %s135
    %s139 = sphi 0, %s138
    %s155 = sphi 0, %s139
    %s161 = sphi 0, %s163
    %s164 = sphi 0, %s161
    %s165 = sphi 0, %s164
    %s181 = sphi 0, %s165
    %s185 = sphi 0, %s185
    %s187 = sphi 0, %s185
    %s188 = sphi 0, %s187
    %s202 = sphi 0, %s188
    %s206 = sphi 0, %s206
    %s208 = sphi 0, %s206
    %s209 = sphi 0, %s208
    %s223 = sphi 0, %s209
    %s227 = sphi 0, %s227
    %s229 = sphi 0, %s227
    %s230 = sphi 0, %s229
    %s244 = sphi 0, %s230
    %s248 = sphi 0, %s248
    %s250 = sphi 0, %s248
    %s251 = sphi 0, %s250
    %s265 = sphi 0, %s251
    %s269 = sphi 0, %s269
    %s271 = sphi 0, %s269
    %s272 = sphi 0, %s271
    %s286 = sphi 0, %s272
    %s290 = sphi 0, %s290
    %s292 = sphi 0, %s290
    %s293 = sphi 0, %s292
    %s307 = sphi 0, %s293
    %s313 = sphi 0, %s315
    %s316 = sphi 0, %s313
    %s317 = sphi 0, %s316
    %s333 = sphi 0, %s317
    %s339 = sphi 0, %s341
    %s342 = sphi 0, %s339
    %s343 = sphi 0, %s342
    %s359 = sphi 0, %s343
    %s365 = sphi 0, %s367
    %s368 = sphi 0, %s365
    %s369 = sphi 0, %s368
    %s385 = sphi 0, %s369
  $region4: #{gradient_induced_transition_fwd.1} parent=0 // loop_header_branch
    %24 = sbr.rel (%p22) target = $region8
  $region5: #{gradient_induced_transition_fwd.1} parent=0 // loop_body
    %s26 = ssub.s32 %s21, 1
    %s27 = ssub.s32 %s21, 2
    %s28 = sadd.s32 %s21, 1
    %s29 = ssub.s32 %s21, %s28
    %p30 = scmp.eq.s32.totalorder %s29, 0
    %s32 = sadd.s32 %s31, 1
    %s33 = scalar_select %p30, %s31, %s32
    %p36 = pneg %p30
    %p37 = scmp.eq.s32.totalorder %s21, 1
    %p38 = por %p36, %p37
    %p39 = scmp.ne.s32.totalorder %s31, %s34
    %p40 = scmp.eq.s32.totalorder %s21, 0
    %p41 = por %p39, %p40
    %p42 = scmp.ne.s32.totalorder %s31, %s34
    %p43 = scmp.eq.s32.totalorder %s26, 1
    %p44 = por %p42, %p43
    %p45 = scmp.ne.s32.totalorder %s34, %s35
    %p46 = scmp.eq.s32.totalorder %s26, 0
    %p47 = por %p45, %p46
    %p48 = scmp.ne.s32.totalorder %s34, %s35
    %p49 = scmp.eq.s32.totalorder %s27, 1
    %p50 = por %p48, %p49
    %p52 = scmp.ne.s32.totalorder %s35, %s51
    %p53 = scmp.eq.s32.totalorder %s27, 0
    %p54 = por %p52, %p53
    %s55 = ssub.s32 %s21, %s28
    %p56 = scmp.eq.s32.totalorder %s55, 0
    %s58 = sadd.s32 %s57, 1
    %s59 = scalar_select %p56, %s57, %s58
    %p62 = pneg %p56
    %p63 = scmp.eq.s32.totalorder %s21, 1
    %p64 = por %p62, %p63
    %p65 = scmp.ne.s32.totalorder %s57, %s60
    %p66 = scmp.eq.s32.totalorder %s21, 0
    %p67 = por %p65, %p66
    %p68 = scmp.ne.s32.totalorder %s57, %s60
    %p69 = scmp.eq.s32.totalorder %s26, 1
    %p70 = por %p68, %p69
    %p71 = scmp.ne.s32.totalorder %s60, %s61
    %p72 = scmp.eq.s32.totalorder %s26, 0
    %p73 = por %p71, %p72
    %p74 = scmp.ne.s32.totalorder %s60, %s61
    %p75 = scmp.eq.s32.totalorder %s27, 1
    %p76 = por %p74, %p75
    %p78 = scmp.ne.s32.totalorder %s61, %s77
    %p79 = scmp.eq.s32.totalorder %s27, 0
    %p80 = por %p78, %p79
    %s81 = ssub.s32 %s21, %s28
    %p82 = scmp.eq.s32.totalorder %s81, 0
    %s84 = sadd.s32 %s83, 1
    %s85 = scalar_select %p82, %s83, %s84
    %p88 = pneg %p82
    %p89 = scmp.eq.s32.totalorder %s21, 1
    %p90 = por %p88, %p89
    %p91 = scmp.ne.s32.totalorder %s83, %s86
    %p92 = scmp.eq.s32.totalorder %s21, 0
    %p93 = por %p91, %p92
    %p94 = scmp.ne.s32.totalorder %s83, %s86
    %p95 = scmp.eq.s32.totalorder %s26, 1
    %p96 = por %p94, %p95
    %p97 = scmp.ne.s32.totalorder %s86, %s87
    %p98 = scmp.eq.s32.totalorder %s26, 0
    %p99 = por %p97, %p98
    %p100 = scmp.ne.s32.totalorder %s86, %s87
    %p101 = scmp.eq.s32.totalorder %s27, 1
    %p102 = por %p100, %p101
    %p104 = scmp.ne.s32.totalorder %s87, %s103
    %p105 = scmp.eq.s32.totalorder %s27, 0
    %p106 = por %p104, %p105
    %s107 = ssub.s32 %s21, %s28
    %p108 = scmp.eq.s32.totalorder %s107, 0
    %s110 = sadd.s32 %s109, 1
    %s111 = scalar_select %p108, %s109, %s110
    %p114 = pneg %p108
    %p115 = scmp.eq.s32.totalorder %s21, 1
    %p116 = por %p114, %p115
    %p117 = scmp.ne.s32.totalorder %s109, %s112
    %p118 = scmp.eq.s32.totalorder %s21, 0
    %p119 = por %p117, %p118
    %p120 = scmp.ne.s32.totalorder %s109, %s112
    %p121 = scmp.eq.s32.totalorder %s26, 1
    %p122 = por %p120, %p121
    %p123 = scmp.ne.s32.totalorder %s112, %s113
    %p124 = scmp.eq.s32.totalorder %s26, 0
    %p125 = por %p123, %p124
    %p126 = scmp.ne.s32.totalorder %s112, %s113
    %p127 = scmp.eq.s32.totalorder %s27, 1
    %p128 = por %p126, %p127
    %p130 = scmp.ne.s32.totalorder %s113, %s129
    %p131 = scmp.eq.s32.totalorder %s27, 0
    %p132 = por %p130, %p131
    %s133 = ssub.s32 %s21, %s28
    %p134 = scmp.eq.s32.totalorder %s133, 0
    %s136 = sadd.s32 %s135, 1
    %s137 = scalar_select %p134, %s135, %s136
    %p140 = pneg %p134
    %p141 = scmp.eq.s32.totalorder %s21, 1
    %p142 = por %p140, %p141
    %p143 = scmp.ne.s32.totalorder %s135, %s138
    %p144 = scmp.eq.s32.totalorder %s21, 0
    %p145 = por %p143, %p144
    %p146 = scmp.ne.s32.totalorder %s135, %s138
    %p147 = scmp.eq.s32.totalorder %s26, 1
    %p148 = por %p146, %p147
    %p149 = scmp.ne.s32.totalorder %s138, %s139
    %p150 = scmp.eq.s32.totalorder %s26, 0
    %p151 = por %p149, %p150
    %p152 = scmp.ne.s32.totalorder %s138, %s139
    %p153 = scmp.eq.s32.totalorder %s27, 1
    %p154 = por %p152, %p153
    %p156 = scmp.ne.s32.totalorder %s139, %s155
    %p157 = scmp.eq.s32.totalorder %s27, 0
    %p158 = por %p156, %p157
    %s159 = ssub.s32 %s21, %s28
    %p160 = scmp.eq.s32.totalorder %s159, 0
    %s162 = sadd.s32 %s161, 1
    %s163 = scalar_select %p160, %s161, %s162
    %p166 = pneg %p160
    %p167 = scmp.eq.s32.totalorder %s21, 1
    %p168 = por %p166, %p167
    %p169 = scmp.ne.s32.totalorder %s161, %s164
    %p170 = scmp.eq.s32.totalorder %s21, 0
    %p171 = por %p169, %p170
    %p172 = scmp.ne.s32.totalorder %s161, %s164
    %p173 = scmp.eq.s32.totalorder %s26, 1
    %p174 = por %p172, %p173
    %p175 = scmp.ne.s32.totalorder %s164, %s165
    %p176 = scmp.eq.s32.totalorder %s26, 0
    %p177 = por %p175, %p176
    %p178 = scmp.ne.s32.totalorder %s164, %s165
    %p179 = scmp.eq.s32.totalorder %s27, 1
    %p180 = por %p178, %p179
    %p182 = scmp.ne.s32.totalorder %s165, %s181
    %p183 = scmp.eq.s32.totalorder %s27, 0
    %p184 = por %p182, %p183
    %s186 = sadd.s32 %s185, 1
    %p189 = scmp.eq.s32.totalorder %s21, 1
    %p190 = scmp.ne.s32.totalorder %s185, %s187
    %p191 = scmp.eq.s32.totalorder %s21, 0
    %p192 = por %p190, %p191
    %p193 = scmp.ne.s32.totalorder %s185, %s187
    %p194 = scmp.eq.s32.totalorder %s26, 1
    %p195 = por %p193, %p194
    %p196 = scmp.ne.s32.totalorder %s187, %s188
    %p197 = scmp.eq.s32.totalorder %s26, 0
    %p198 = por %p196, %p197
    %p199 = scmp.ne.s32.totalorder %s187, %s188
    %p200 = scmp.eq.s32.totalorder %s27, 1
    %p201 = por %p199, %p200
    %p203 = scmp.ne.s32.totalorder %s188, %s202
    %p204 = scmp.eq.s32.totalorder %s27, 0
    %p205 = por %p203, %p204
    %s207 = sadd.s32 %s206, 1
    %p210 = scmp.eq.s32.totalorder %s21, 1
    %p211 = scmp.ne.s32.totalorder %s206, %s208
    %p212 = scmp.eq.s32.totalorder %s21, 0
    %p213 = por %p211, %p212
    %p214 = scmp.ne.s32.totalorder %s206, %s208
    %p215 = scmp.eq.s32.totalorder %s26, 1
    %p216 = por %p214, %p215
    %p217 = scmp.ne.s32.totalorder %s208, %s209
    %p218 = scmp.eq.s32.totalorder %s26, 0
    %p219 = por %p217, %p218
    %p220 = scmp.ne.s32.totalorder %s208, %s209
    %p221 = scmp.eq.s32.totalorder %s27, 1
    %p222 = por %p220, %p221
    %p224 = scmp.ne.s32.totalorder %s209, %s223
    %p225 = scmp.eq.s32.totalorder %s27, 0
    %p226 = por %p224, %p225
    %s228 = sadd.s32 %s227, 1
    %p231 = scmp.eq.s32.totalorder %s21, 1
    %p232 = scmp.ne.s32.totalorder %s227, %s229
    %p233 = scmp.eq.s32.totalorder %s21, 0
    %p234 = por %p232, %p233
    %p235 = scmp.ne.s32.totalorder %s227, %s229
    %p236 = scmp.eq.s32.totalorder %s26, 1
    %p237 = por %p235, %p236
    %p238 = scmp.ne.s32.totalorder %s229, %s230
    %p239 = scmp.eq.s32.totalorder %s26, 0
    %p240 = por %p238, %p239
    %p241 = scmp.ne.s32.totalorder %s229, %s230
    %p242 = scmp.eq.s32.totalorder %s27, 1
    %p243 = por %p241, %p242
    %p245 = scmp.ne.s32.totalorder %s230, %s244
    %p246 = scmp.eq.s32.totalorder %s27, 0
    %p247 = por %p245, %p246
    %s249 = sadd.s32 %s248, 1
    %p252 = scmp.eq.s32.totalorder %s21, 1
    %p253 = scmp.ne.s32.totalorder %s248, %s250
    %p254 = scmp.eq.s32.totalorder %s21, 0
    %p255 = por %p253, %p254
    %p256 = scmp.ne.s32.totalorder %s248, %s250
    %p257 = scmp.eq.s32.totalorder %s26, 1
    %p258 = por %p256, %p257
    %p259 = scmp.ne.s32.totalorder %s250, %s251
    %p260 = scmp.eq.s32.totalorder %s26, 0
    %p261 = por %p259, %p260
    %p262 = scmp.ne.s32.totalorder %s250, %s251
    %p263 = scmp.eq.s32.totalorder %s27, 1
    %p264 = por %p262, %p263
    %p266 = scmp.ne.s32.totalorder %s251, %s265
    %p267 = scmp.eq.s32.totalorder %s27, 0
    %p268 = por %p266, %p267
    %s270 = sadd.s32 %s269, 1
    %p273 = scmp.eq.s32.totalorder %s21, 1
    %p274 = scmp.ne.s32.totalorder %s269, %s271
    %p275 = scmp.eq.s32.totalorder %s21, 0
    %p276 = por %p274, %p275
    %p277 = scmp.ne.s32.totalorder %s269, %s271
    %p278 = scmp.eq.s32.totalorder %s26, 1
    %p279 = por %p277, %p278
    %p280 = scmp.ne.s32.totalorder %s271, %s272
    %p281 = scmp.eq.s32.totalorder %s26, 0
    %p282 = por %p280, %p281
    %p283 = scmp.ne.s32.totalorder %s271, %s272
    %p284 = scmp.eq.s32.totalorder %s27, 1
    %p285 = por %p283, %p284
    %p287 = scmp.ne.s32.totalorder %s272, %s286
    %p288 = scmp.eq.s32.totalorder %s27, 0
    %p289 = por %p287, %p288
    %s291 = sadd.s32 %s290, 1
    %p294 = scmp.eq.s32.totalorder %s21, 1
    %p295 = scmp.ne.s32.totalorder %s290, %s292
    %p296 = scmp.eq.s32.totalorder %s21, 0
    %p297 = por %p295, %p296
    %p298 = scmp.ne.s32.totalorder %s290, %s292
    %p299 = scmp.eq.s32.totalorder %s26, 1
    %p300 = por %p298, %p299
    %p301 = scmp.ne.s32.totalorder %s292, %s293
    %p302 = scmp.eq.s32.totalorder %s26, 0
    %p303 = por %p301, %p302
    %p304 = scmp.ne.s32.totalorder %s292, %s293
    %p305 = scmp.eq.s32.totalorder %s27, 1
    %p306 = por %p304, %p305
    %p308 = scmp.ne.s32.totalorder %s293, %s307
    %p309 = scmp.eq.s32.totalorder %s27, 0
    %p310 = por %p308, %p309
    %s311 = ssub.s32 %s21, %s28
    %p312 = scmp.eq.s32.totalorder %s311, 0
    %s314 = sadd.s32 %s313, 1
    %s315 = scalar_select %p312, %s313, %s314
    %p318 = pneg %p312
    %p319 = scmp.eq.s32.totalorder %s21, 1
    %p320 = por %p318, %p319
    %p321 = scmp.ne.s32.totalorder %s313, %s316
    %p322 = scmp.eq.s32.totalorder %s21, 0
    %p323 = por %p321, %p322
    %p324 = scmp.ne.s32.totalorder %s313, %s316
    %p325 = scmp.eq.s32.totalorder %s26, 1
    %p326 = por %p324, %p325
    %p327 = scmp.ne.s32.totalorder %s316, %s317
    %p328 = scmp.eq.s32.totalorder %s26, 0
    %p329 = por %p327, %p328
    %p330 = scmp.ne.s32.totalorder %s316, %s317
    %p331 = scmp.eq.s32.totalorder %s27, 1
    %p332 = por %p330, %p331
    %p334 = scmp.ne.s32.totalorder %s317, %s333
    %p335 = scmp.eq.s32.totalorder %s27, 0
    %p336 = por %p334, %p335
    %s337 = ssub.s32 %s21, %s28
    %p338 = scmp.eq.s32.totalorder %s337, 0
    %s340 = sadd.s32 %s339, 1
    %s341 = scalar_select %p338, %s339, %s340
    %p344 = pneg %p338
    %p345 = scmp.eq.s32.totalorder %s21, 1
    %p346 = por %p344, %p345
    %p347 = scmp.ne.s32.totalorder %s339, %s342
    %p348 = scmp.eq.s32.totalorder %s21, 0
    %p349 = por %p347, %p348
    %p350 = scmp.ne.s32.totalorder %s339, %s342
    %p351 = scmp.eq.s32.totalorder %s26, 1
    %p352 = por %p350, %p351
    %p353 = scmp.ne.s32.totalorder %s342, %s343
    %p354 = scmp.eq.s32.totalorder %s26, 0
    %p355 = por %p353, %p354
    %p356 = scmp.ne.s32.totalorder %s342, %s343
    %p357 = scmp.eq.s32.totalorder %s27, 1
    %p358 = por %p356, %p357
    %p360 = scmp.ne.s32.totalorder %s343, %s359
    %p361 = scmp.eq.s32.totalorder %s27, 0
    %p362 = por %p360, %p361
    %s363 = ssub.s32 %s21, %s28
    %p364 = scmp.eq.s32.totalorder %s363, 0
    %s366 = sadd.s32 %s365, 1
    %s367 = scalar_select %p364, %s365, %s366
    %p370 = pneg %p364
    %p371 = scmp.eq.s32.totalorder %s21, 1
    %p372 = por %p370, %p371
    %p373 = scmp.ne.s32.totalorder %s365, %s368
    %p374 = scmp.eq.s32.totalorder %s21, 0
    %p375 = por %p373, %p374
    %p376 = scmp.ne.s32.totalorder %s365, %s368
    %p377 = scmp.eq.s32.totalorder %s26, 1
    %p378 = por %p376, %p377
    %p379 = scmp.ne.s32.totalorder %s368, %s369
    %p380 = scmp.eq.s32.totalorder %s26, 0
    %p381 = por %p379, %p380
    %p382 = scmp.ne.s32.totalorder %s368, %s369
    %p383 = scmp.eq.s32.totalorder %s27, 1
    %p384 = por %p382, %p383
    %p386 = scmp.ne.s32.totalorder %s369, %s385
    %p387 = scmp.eq.s32.totalorder %s27, 0
    %p388 = por %p386, %p387
    %p389 = scmp.le.s32.totalorder 1, %s21
    %p390 = scmp.lt.s32.totalorder %s21, 3
    %p391 = pnand %p389, %p390
    %p392 = pneg %p391
    // Predicated region
    $region9: #{gradient_induced_transition_fwd.1} parent=5 // pred_check
      _
    $region10: #{gradient_induced_transition_fwd.1} parent=5 // pred_check_branch
      %394 = sbr.rel (%p391) target = $region12
    $region11: #{gradient_induced_transition_fwd.1} parent=5 // pred_region
      %s395 = ssub.s32 %s21, 1
      // Predicated region
      $region13: #{gradient_induced_transition_fwd.1} parent=11 // pred_check
        %p396 = pneg %p198
      $region14: #{gradient_induced_transition_fwd.1} parent=11 // pred_check_branch
        %398 = sbr.rel (%p396) target = $region16
      $region15: #{gradient_induced_transition_fwd.1} parent=11 // pred_region
        _
      $region16: #{gradient_induced_transition_fwd.1} parent=11 // pred_fallthru
        _
      // Predicated region
      $region17: #{gradient_induced_transition_fwd.1} parent=11 // pred_check
        %p399 = pneg %p219
      $region18: #{gradient_induced_transition_fwd.1} parent=11 // pred_check_branch
        %401 = sbr.rel (%p399) target = $region20
      $region19: #{gradient_induced_transition_fwd.1} parent=11 // pred_region
        _
      $region20: #{gradient_induced_transition_fwd.1} parent=11 // pred_fallthru
        _
      // Predicated region
      $region21: #{gradient_induced_transition_fwd.1} parent=11 // pred_check
        %p402 = pneg %p240
      $region22: #{gradient_induced_transition_fwd.1} parent=11 // pred_check_branch
        %404 = sbr.rel (%p402) target = $region24
      $region23: #{gradient_induced_transition_fwd.1} parent=11 // pred_region
        _
      $region24: #{gradient_induced_transition_fwd.1} parent=11 // pred_fallthru
        _
      // Predicated region
      $region25: #{gradient_induced_transition_fwd.1} parent=11 // pred_check
        %p405 = pneg %p261
      $region26: #{gradient_induced_transition_fwd.1} parent=11 // pred_check_branch
        %407 = sbr.rel (%p405) target = $region28
      $region27: #{gradient_induced_transition_fwd.1} parent=11 // pred_region
        _
      $region28: #{gradient_induced_transition_fwd.1} parent=11 // pred_fallthru
        _
      // Predicated region
      $region29: #{gradient_induced_transition_fwd.1} parent=11 // pred_check
        %p408 = pneg %p282
      $region30: #{gradient_induced_transition_fwd.1} parent=11 // pred_check_branch
        %410 = sbr.rel (%p408) target = $region32
      $region31: #{gradient_induced_transition_fwd.1} parent=11 // pred_region
        _
      $region32: #{gradient_induced_transition_fwd.1} parent=11 // pred_fallthru
        _
      // Predicated region
      $region33: #{gradient_induced_transition_fwd.1} parent=11 // pred_check
        %p411 = pneg %p303
      $region34: #{gradient_induced_transition_fwd.1} parent=11 // pred_check_branch
        %413 = sbr.rel (%p411) target = $region36
      $region35: #{gradient_induced_transition_fwd.1} parent=11 // pred_region
        _
      $region36: #{gradient_induced_transition_fwd.1} parent=11 // pred_fallthru
        _
    $region12: #{gradient_induced_transition_fwd.1} parent=5 // pred_fallthru
      _
    %p414 = scmp.lt.s32.totalorder %s21, 2
    // Predicated region
    $region37: #{gradient_induced_transition_fwd.1} parent=5 // pred_check
      %p415 = pneg %p414
    $region38: #{gradient_induced_transition_fwd.1} parent=5 // pred_check_branch
      %417 = sbr.rel (%p415) target = $region40
    $region39: #{gradient_induced_transition_fwd.1} parent=5 // pred_region
      // Predicated region
      $region41: #{gradient_induced_transition_fwd.1} parent=39 // pred_check
        %p418 = pneg %p41
      $region42: #{gradient_induced_transition_fwd.1} parent=39 // pred_check_branch
        %420 = sbr.rel (%p418) target = $region44
      $region43: #{gradient_induced_transition_fwd.1} parent=39 // pred_region
        %p421 = scmp.lt.s32.totalorder %s21, 1
        %s422 = scalar_select %p421, %s21, 1
        %s423 = smul.addr %s422, 8
        %s424 = smul.addr %s423, 8
        %s425 = scalar_lea.vmem %s0, %s424
      $region44: #{gradient_induced_transition_fwd.1} parent=39 // pred_fallthru
        _
      // Predicated region
      $region45: #{gradient_induced_transition_fwd.1} parent=39 // pred_check
        %p426 = pneg %p67
      $region46: #{gradient_induced_transition_fwd.1} parent=39 // pred_check_branch
        %428 = sbr.rel (%p426) target = $region48
      $region47: #{gradient_induced_transition_fwd.1} parent=39 // pred_region
        %p429 = scmp.lt.s32.totalorder %s21, 1
        %s430 = scalar_select %p429, %s21, 1
        %s431 = smul.addr %s430, 8
        %s432 = smul.addr %s431, 8
        %s433 = scalar_lea.vmem %s1, %s432
      $region48: #{gradient_induced_transition_fwd.1} parent=39 // pred_fallthru
        _
      // Predicated region
      $region49: #{gradient_induced_transition_fwd.1} parent=39 // pred_check
        %p434 = pneg %p93
      $region50: #{gradient_induced_transition_fwd.1} parent=39 // pred_check_branch
        %436 = sbr.rel (%p434) target = $region52
      $region51: #{gradient_induced_transition_fwd.1} parent=39 // pred_region
        %p437 = scmp.lt.s32.totalorder %s21, 1
        %s438 = scalar_select %p437, %s21, 1
        %s439 = smul.addr %s438, 4
        %s440 = smul.addr %s439, 8
        %s441 = scalar_lea.vmem %s2, %s440
      $region52: #{gradient_induced_transition_fwd.1} parent=39 // pred_fallthru
        _
      // Predicated region
      $region53: #{gradient_induced_transition_fwd.1} parent=39 // pred_check
        %p442 = pneg %p119
      $region54: #{gradient_induced_transition_fwd.1} parent=39 // pred_check_branch
        %444 = sbr.rel (%p442) target = $region56
      $region55: #{gradient_induced_transition_fwd.1} parent=39 // pred_region
        %p445 = scmp.lt.s32.totalorder %s21, 1
        %s446 = scalar_select %p445, %s21, 1
        %s447 = smul.addr %s446, 4
        %s448 = smul.addr %s447, 8
        %s449 = scalar_lea.vmem %s3, %s448
      $region56: #{gradient_induced_transition_fwd.1} parent=39 // pred_fallthru
        _
      // Predicated region
      $region57: #{gradient_induced_transition_fwd.1} parent=39 // pred_check
        %p450 = pneg %p145
      $region58: #{gradient_induced_transition_fwd.1} parent=39 // pred_check_branch
        %452 = sbr.rel (%p450) target = $region60
      $region59: #{gradient_induced_transition_fwd.1} parent=39 // pred_region
        %p453 = scmp.lt.s32.totalorder %s21, 1
        %s454 = scalar_select %p453, %s21, 1
        %s455 = smul.addr %s454, 4
        %s456 = smul.addr %s455, 8
        %s457 = scalar_lea.vmem %s4, %s456
      $region60: #{gradient_induced_transition_fwd.1} parent=39 // pred_fallthru
        _
      // Predicated region
      $region61: #{gradient_induced_transition_fwd.1} parent=39 // pred_check
        %p458 = pneg %p171
      $region62: #{gradient_induced_transition_fwd.1} parent=39 // pred_check_branch
        %460 = sbr.rel (%p458) target = $region64
      $region63: #{gradient_induced_transition_fwd.1} parent=39 // pred_region
        %p461 = scmp.lt.s32.totalorder %s21, 1
        %s462 = scalar_select %p461, %s21, 1
        %s463 = smul.addr %s462, 4
        %s464 = smul.addr %s463, 8
        %s465 = scalar_lea.vmem %s5, %s464
      $region64: #{gradient_induced_transition_fwd.1} parent=39 // pred_fallthru
        _
    $region40: #{gradient_induced_transition_fwd.1} parent=5 // pred_fallthru
      _
    %p466 = scmp.le.s32.totalorder 1, %s21
    %p467 = scmp.lt.s32.totalorder %s21, 3
    %p468 = pnand %p466, %p467
    %p469 = pneg %p468
    // Predicated region
    $region65: #{gradient_induced_transition_fwd.1} parent=5 // pred_check
      _
    $region66: #{gradient_induced_transition_fwd.1} parent=5 // pred_check_branch
      %471 = sbr.rel (%p468) target = $region68
    $region67: #{gradient_induced_transition_fwd.1} parent=5 // pred_region
      %s472 = ssub.s32 %s21, 1
      %p473 = scmp.lt.s32.totalorder %s26, 1
      %s474 = scalar_select %p473, %s26, 1
      %s475 = smul.addr %s474, 8
      %s476 = smul.addr %s475, 8
      %s477 = scalar_lea.vmem %s0, %s476
      %p478 = pneg %p47
      %p479 = pneg %p44
      %p480 = scmp.lt.s32.totalorder %s26, 1
      %s481 = scalar_select %p480, %s26, 1
      %s482 = smul.addr %s481, 8
      %s483 = smul.addr %s482, 8
      %s484 = scalar_lea.vmem %s1, %s483
      %p485 = pneg %p73
      %p486 = pneg %p70
      %p487 = scmp.lt.s32.totalorder %s26, 1
      %s488 = scalar_select %p487, %s26, 1
      %s489 = smul.addr %s488, 4
      %s490 = smul.addr %s489, 8
      %s491 = scalar_lea.vmem %s2, %s490
      %p492 = pneg %p99
      %p493 = pneg %p96
      %p494 = scmp.lt.s32.totalorder %s26, 1
      %s495 = scalar_select %p494, %s26, 1
      %s496 = smul.addr %s495, 4
      %s497 = smul.addr %s496, 8
      %s498 = scalar_lea.vmem %s3, %s497
      %p499 = pneg %p125
      %p500 = pneg %p122
      %p501 = scmp.lt.s32.totalorder %s26, 1
      %s502 = scalar_select %p501, %s26, 1
      %s503 = smul.addr %s502, 4
      %s504 = smul.addr %s503, 8
      %s505 = scalar_lea.vmem %s4, %s504
      %p506 = pneg %p151
      %p507 = pneg %p148
      %p508 = scmp.lt.s32.totalorder %s26, 1
      %s509 = scalar_select %p508, %s26, 1
      %s510 = smul.addr %s509, 4
      %s511 = smul.addr %s510, 8
      %s512 = scalar_lea.vmem %s5, %s511
      %p513 = pneg %p177
      %p514 = pneg %p174
      %p515 = pneg %p198
      %p516 = pneg %p195
      %p517 = pneg %p219
      %p518 = pneg %p216
      %p519 = pneg %p240
      %p520 = pneg %p237
      %p521 = pneg %p261
      %p522 = pneg %p258
      %p523 = pneg %p282
      %p524 = pneg %p279
      %p525 = pneg %p303
      %p526 = pneg %p300
      %p527 = pneg %p329
      %p528 = pneg %p326
      %p529 = scmp.lt.s32.totalorder %s26, 1
      %s530 = scalar_select %p529, %s26, 1
      %s531 = smul.addr %s530, 8
      %s532 = smul.addr %s531, 8
      %s533 = scalar_lea.vmem %s12, %s532
      %p534 = pneg %p355
      %p535 = pneg %p352
      %p536 = scmp.lt.s32.totalorder %s26, 1
      %s537 = scalar_select %p536, %s26, 1
      %s538 = smul.addr %s537, 4
      %s539 = smul.addr %s538, 8
      %s540 = scalar_lea.vmem %s13, %s539
      %p541 = pneg %p381
      %p542 = pneg %p378
      %p543 = scmp.lt.s32.totalorder %s26, 1
      %s544 = scalar_select %p543, %s26, 1
      %s545 = smul.addr %s544, 4
      %s546 = smul.addr %s545, 8
      %s547 = scalar_lea.vmem %s14, %s546
      %p548 = scmp.lt.s32.totalorder %s26, 1
      %s549 = scalar_select %p548, %s26, 1
      %s550 = smul.addr %s549, 8
      %s551 = smul.addr %s550, 8
      %s552 = scalar_lea.vmem %s0, %s551
      %p553 = scmp.lt.s32.totalorder %s26, 1
      %s554 = scalar_select %p553, %s26, 1
      %s555 = smul.addr %s554, 8
      %s556 = smul.addr %s555, 8
      %s557 = scalar_lea.vmem %s1, %s556
      %p558 = scmp.lt.s32.totalorder %s26, 1
      %s559 = scalar_select %p558, %s26, 1
      %s560 = smul.addr %s559, 4
      %s561 = smul.addr %s560, 8
      %s562 = scalar_lea.vmem %s2, %s561
      %p563 = scmp.lt.s32.totalorder %s26, 1
      %s564 = scalar_select %p563, %s26, 1
      %s565 = smul.addr %s564, 4
      %s566 = smul.addr %s565, 8
      %s567 = scalar_lea.vmem %s3, %s566
      %p568 = scmp.lt.s32.totalorder %s26, 1
      %s569 = scalar_select %p568, %s26, 1
      %s570 = smul.addr %s569, 4
      %s571 = smul.addr %s570, 8
      %s572 = scalar_lea.vmem %s4, %s571
      %p573 = scmp.lt.s32.totalorder %s26, 1
      %s574 = scalar_select %p573, %s26, 1
      %s575 = smul.addr %s574, 4
      %s576 = smul.addr %s575, 8
      %s577 = scalar_lea.vmem %s5, %s576
      %p578 = scmp.lt.s32.totalorder %s26, 1
      %s579 = scalar_select %p578, %s26, 1
      %s580 = smul.addr %s579, 8
      %s581 = smul.addr %s580, 8
      %s582 = scalar_lea.vmem %s12, %s581
      %p583 = scmp.lt.s32.totalorder %s26, 1
      %s584 = scalar_select %p583, %s26, 1
      %s585 = smul.addr %s584, 4
      %s586 = smul.addr %s585, 8
      %s587 = scalar_lea.vmem %s13, %s586
      %p588 = scmp.lt.s32.totalorder %s26, 1
      %s589 = scalar_select %p588, %s26, 1
      %s590 = smul.addr %s589, 4
      %s591 = smul.addr %s590, 8
      %s592 = scalar_lea.vmem %s14, %s591
      %v593 = vld [vmem:[%s552] sm:$0xff]
      %v594 = vld [vmem:[%s552 + $0x8] sm:$0xff]
      %v595 = vld [vmem:[%s552 + $0x10] sm:$0xff]
      %v596 = vld [vmem:[%s552 + $0x18] sm:$0xff]
      %v597 = vld [vmem:[%s552 + $0x20] sm:$0xff]
      %v598 = vld [vmem:[%s552 + $0x28] sm:$0xff]
      %v599 = vld [vmem:[%s552 + $0x30] sm:$0xff]
      %v600 = vld [vmem:[%s552 + $0x38] sm:$0xff]
      %v601 = vld [vmem:[%s6] sm:$0xff]
      %v602 = vld [vmem:[%s6 + $0x8] sm:$0xff]
      %v603 = vld [vmem:[%s6 + $0x10] sm:$0xff]
      %v604 = vld [vmem:[%s6 + $0x18] sm:$0xff]
      %v605 = vld [vmem:[%s7] sm:$0xff]
      %v606 = vld [vmem:[%s7 + $0x8] sm:$0xff]
      %v607 = vld [vmem:[%s7 + $0x10] sm:$0xff]
      %v608 = vld [vmem:[%s7 + $0x18] sm:$0xff]
      %v609 = vld [vmem:[%s557] sm:$0xff]
      %v610 = vld [vmem:[%s557 + $0x8] sm:$0xff]
      %v611 = vld [vmem:[%s557 + $0x10] sm:$0xff]
      %v612 = vld [vmem:[%s557 + $0x18] sm:$0xff]
      %v613 = vld [vmem:[%s557 + $0x20] sm:$0xff]
      %v614 = vld [vmem:[%s557 + $0x28] sm:$0xff]
      %v615 = vld [vmem:[%s557 + $0x30] sm:$0xff]
      %v616 = vld [vmem:[%s557 + $0x38] sm:$0xff]
      %vm617 = vcmask 261120
      %v619 = vsel %vm617, %v605, 0
      %v622 = vsel %vm617, %v606, 0
      %v625 = vsel %vm617, %v607, 0
      %v628 = vsel %vm617, %v608, 0
      %630 = vmatprep.subr.mxu0 %v610
      %631 = vmatpush1.msra.mxu0 %v609
      %632 = vmatprep.subr.mxu0 %v612
      %633 = vmatpush1.msra.mxu0 %v611
      %634 = vmatprep.subr.mxu0 %v614
      %635 = vmatpush1.msra.mxu0 %v613
      %636 = vmatprep.subr.mxu0 %v616
      %637 = vmatpush1.msra.mxu0 %v615
      %638 = vmatprep.subr.mxu0 0.0
      %639 = vmatpush1.msra.mxu0 0.0
      %640 = vmatprep.subr.mxu0 0.0
      %641 = vmatpush1.msra.mxu0 0.0
      %642 = vmatprep.subr.mxu0 0.0
      %643 = vmatpush1.msra.mxu0 0.0
      %644 = vmatprep.subr.mxu0 0.0
      %645 = vmatpush1.msra.mxu0 0.0
      %646 = vmatprep.subr.mxu0 0.0
      %647 = vmatpush1.msra.mxu0 0.0
      %648 = vmatprep.subr.mxu0 0.0
      %649 = vmatpush1.msra.mxu0 0.0
      %650 = vmatprep.subr.mxu0 0.0
      %651 = vmatpush1.msra.mxu0 0.0
      %652 = vmatprep.subr.mxu0 0.0
      %653 = vmatpush1.msra.mxu0 0.0
      %654 = vmatprep.subr.mxu0 0.0
      %655 = vmatpush1.msra.mxu0 0.0
      %656 = vmatprep.subr.mxu0 0.0
      %657 = vmatpush1.msra.mxu0 0.0
      %658 = vmatprep.subr.mxu0 0.0
      %659 = vmatpush1.msra.mxu0 0.0
      %660 = vmatprep.subr.mxu0 0.0
      %661 = vmatpush1.msra.mxu0 0.0
      %662 = vmatprep.subr.mxu0 0.0
      %663 = vmatpush1.msra.mxu0 0.0
      %664 = vmatprep.subr.mxu0 0.0
      %665 = vmatpush1.msra.mxu0 0.0
      %666 = vmatprep.subr.mxu0 0.0
      %667 = vmatpush1.msra.mxu0 0.0
      %668 = vmatprep.subr.mxu0 0.0
      %669 = vmatpush1.msra.mxu0 0.0
      %670 = vmatprep.subr.mxu0 0.0
      %671 = vmatpush1.msra.mxu0 0.0
      %672 = vmatprep.subr.mxu0 0.0
      %673 = vmatpush1.msra.mxu0 0.0
      %674 = vmatprep.subr.mxu0 0.0
      %675 = vmatpush1.msra.mxu0 0.0
      %676 = vmatprep.subr.mxu0 0.0
      %677 = vmatpush1.msra.mxu0 0.0
      %678 = vmatprep.subr.mxu0 0.0
      %679 = vmatpush1.msra.mxu0 0.0
      %680 = vmatprep.subr.mxu0 0.0
      %681 = vmatpush1.msra.mxu0 0.0
      %682 = vmatprep.subr.mxu0 0.0
      %683 = vmatpush1.msra.mxu0 0.0
      %684 = vmatprep.subr.mxu0 0.0
      %685 = vmatpush1.msra.mxu0 0.0
      %686 = vmatprep.subr.mxu0 0.0
      %687 = vmatpush1.msra.mxu0 0.0
      %688 = vmatprep.subr.mxu0 0.0
      %689 = vmatpush1.msra.mxu0 0.0
      %690 = vmatprep.subr.mxu0 0.0
      %691 = vmatpush1.msra.mxu0 0.0
      %692 = vmatprep.subr.mxu0 0.0
      %693 = vmatpush1.msra.mxu0 0.0
      %694 = vmatprep.mubr.f32.mxu0 0.0
      %695 = vmatmul.mubr.f32.gmra.mrb[0].mxu0 %v619
      %v696 = vpop.f32.mrb[0].mxu0
      %v697 = vadd.f32 0.0, %v696
      %v698 = vpop.f32.mrb[0].mxu0
      %v699 = vadd.f32 0.0, %v698
      %700 = vmatprep.mubr.f32.mxu0 0.0
      %701 = vmatmul.mubr.f32.gmra.mrb[0].mxu0 %v622
      %v702 = vpop.f32.mrb[0].mxu0
      %v703 = vadd.f32 0.0, %v702
      %v704 = vpop.f32.mrb[0].mxu0
      %v705 = vadd.f32 0.0, %v704
      %706 = vmatprep.mubr.f32.mxu0 0.0
      %707 = vmatmul.mubr.f32.gmra.mrb[0].mxu0 %v625
      %v708 = vpop.f32.mrb[0].mxu0
      %v709 = vadd.f32 0.0, %v708
      %v710 = vpop.f32.mrb[0].mxu0
      %v711 = vadd.f32 0.0, %v710
      %712 = vmatprep.mubr.f32.mxu0 0.0
      %713 = vmatmul.mubr.f32.gmra.mrb[0].mxu0 %v628
      %v714 = vpop.f32.mrb[0].mxu0
      %v715 = vadd.f32 0.0, %v714
      %v716 = vpop.f32.mrb[0].mxu0
      %v717 = vadd.f32 0.0, %v716
      %718 = vdwg.mxu0
      %v720 = vsel %vm617, %v601, 0
      %v723 = vsel %vm617, %v602, 0
      %v726 = vsel %vm617, %v603, 0
      %v729 = vsel %vm617, %v604, 0
      %731 = vmatprep.subr.mxu0 %v594
      %732 = vmatpush1.msra.mxu0 %v593
      %733 = vmatprep.subr.mxu0 %v596
      %734 = vmatpush1.msra.mxu0 %v595
      %735 = vmatprep.subr.mxu0 %v598
      %736 = vmatpush1.msra.mxu0 %v597
      %737 = vmatprep.subr.mxu0 %v600
      %738 = vmatpush1.msra.mxu0 %v599
      %739 = vmatprep.subr.mxu0 0.0
      %740 = vmatpush1.msra.mxu0 0.0
      %741 = vmatprep.subr.mxu0 0.0
      %742 = vmatpush1.msra.mxu0 0.0
      %743 = vmatprep.subr.mxu0 0.0
      %744 = vmatpush1.msra.mxu0 0.0
      %745 = vmatprep.subr.mxu0 0.0
      %746 = vmatpush1.msra.mxu0 0.0
      %747 = vmatprep.subr.mxu0 0.0
      %748 = vmatpush1.msra.mxu0 0.0
      %749 = vmatprep.subr.mxu0 0.0
      %750 = vmatpush1.msra.mxu0 0.0
      %751 = vmatprep.subr.mxu0 0.0
      %752 = vmatpush1.msra.mxu0 0.0
      %753 = vmatprep.subr.mxu0 0.0
      %754 = vmatpush1.msra.mxu0 0.0
      %755 = vmatprep.subr.mxu0 0.0
      %756 = vmatpush1.msra.mxu0 0.0
      %757 = vmatprep.subr.mxu0 0.0
      %758 = vmatpush1.msra.mxu0 0.0
      %759 = vmatprep.subr.mxu0 0.0
      %760 = vmatpush1.msra.mxu0 0.0
      %761 = vmatprep.subr.mxu0 0.0
      %762 = vmatpush1.msra.mxu0 0.0
      %763 = vmatprep.subr.mxu0 0.0
      %764 = vmatpush1.msra.mxu0 0.0
      %765 = vmatprep.subr.mxu0 0.0
      %766 = vmatpush1.msra.mxu0 0.0
      %767 = vmatprep.subr.mxu0 0.0
      %768 = vmatpush1.msra.mxu0 0.0
      %769 = vmatprep.subr.mxu0 0.0
      %770 = vmatpush1.msra.mxu0 0.0
      %771 = vmatprep.subr.mxu0 0.0
      %772 = vmatpush1.msra.mxu0 0.0
      %773 = vmatprep.subr.mxu0 0.0
      %774 = vmatpush1.msra.mxu0 0.0
      %775 = vmatprep.subr.mxu0 0.0
      %776 = vmatpush1.msra.mxu0 0.0
      %777 = vmatprep.subr.mxu0 0.0
      %778 = vmatpush1.msra.mxu0 0.0
      %779 = vmatprep.subr.mxu0 0.0
      %780 = vmatpush1.msra.mxu0 0.0
      %781 = vmatprep.subr.mxu0 0.0
      %782 = vmatpush1.msra.mxu0 0.0
      %783 = vmatprep.subr.mxu0 0.0
      %784 = vmatpush1.msra.mxu0 0.0
      %785 = vmatprep.subr.mxu0 0.0
      %786 = vmatpush1.msra.mxu0 0.0
      %787 = vmatprep.subr.mxu0 0.0
      %788 = vmatpush1.msra.mxu0 0.0
      %789 = vmatprep.subr.mxu0 0.0
      %790 = vmatpush1.msra.mxu0 0.0
      %791 = vmatprep.subr.mxu0 0.0
      %792 = vmatpush1.msra.mxu0 0.0
      %793 = vmatprep.subr.mxu0 0.0
      %794 = vmatpush1.msra.mxu0 0.0
      %795 = vmatprep.mubr.f32.mxu0 0.0
      %796 = vmatmul.mubr.f32.gmra.mrb[0].mxu0 %v720
      %v797 = vpop.f32.mrb[0].mxu0
      %v798 = vadd.f32 %v697, %v797
      %v799 = vpop.f32.mrb[0].mxu0
      %v800 = vadd.f32 %v699, %v799
      %801 = vmatprep.mubr.f32.mxu0 0.0
      %802 = vmatmul.mubr.f32.gmra.mrb[0].mxu0 %v723
      %v803 = vpop.f32.mrb[0].mxu0
      %v804 = vadd.f32 %v703, %v803
      %v805 = vpop.f32.mrb[0].mxu0
      %v806 = vadd.f32 %v705, %v805
      %807 = vmatprep.mubr.f32.mxu0 0.0
      %808 = vmatmul.mubr.f32.gmra.mrb[0].mxu0 %v726
      %v809 = vpop.f32.mrb[0].mxu0
      %v810 = vadd.f32 %v709, %v809
      %v811 = vpop.f32.mrb[0].mxu0
      %v812 = vadd.f32 %v711, %v811
      %813 = vmatprep.mubr.f32.mxu0 0.0
      %814 = vmatmul.mubr.f32.gmra.mrb[0].mxu0 %v729
      %v815 = vpop.f32.mrb[0].mxu0
      %v816 = vadd.f32 %v715, %v815
      %v817 = vpop.f32.mrb[0].mxu0
      %v818 = vadd.f32 %v717, %v817
      %819 = vdwg.mxu0
      %v820 = vadd.f32 %v593, %v798
      %v821 = vadd.f32 %v594, %v800
      %v822 = vadd.f32 %v595, %v804
      %v823 = vadd.f32 %v596, %v806
      %v824 = vadd.f32 %v597, %v810
      %v825 = vadd.f32 %v598, %v812
      %v826 = vadd.f32 %v599, %v816
      %v827 = vadd.f32 %v600, %v818
      %828 = vst [vmem:[%s582] sm:$0xff] %v820
      %829 = vst [vmem:[%s582 + $0x8] sm:$0xff] %v821
      %830 = vst [vmem:[%s582 + $0x10] sm:$0xff] %v822
      %831 = vst [vmem:[%s582 + $0x18] sm:$0xff] %v823
      %832 = vst [vmem:[%s582 + $0x20] sm:$0xff] %v824
      %833 = vst [vmem:[%s582 + $0x28] sm:$0xff] %v825
      %834 = vst [vmem:[%s582 + $0x30] sm:$0xff] %v826
      %835 = vst [vmem:[%s582 + $0x38] sm:$0xff] %v827
      %v836 = vld [vmem:[%s562] sm:$0xff]
      %v837 = vld [vmem:[%s562 + $0x8] sm:$0xff]
      %v838 = vld [vmem:[%s562 + $0x10] sm:$0xff]
      %v839 = vld [vmem:[%s562 + $0x18] sm:$0xff]
      %v840 = vld [vmem:[%s8] sm:$0xff]
      %v841 = vld [vmem:[%s8 + $0x8] sm:$0xff]
      %v842 = vld [vmem:[%s8 + $0x10] sm:$0xff]
      %v843 = vld [vmem:[%s8 + $0x18] sm:$0xff]
      %v844 = vld [vmem:[%s9] sm:$0xff]
      %v845 = vld [vmem:[%s9 + $0x8] sm:$0xff]
      %v846 = vld [vmem:[%s9 + $0x10] sm:$0xff]
      %v847 = vld [vmem:[%s9 + $0x18] sm:$0xff]
      %v848 = vld [vmem:[%s567] sm:$0xff]
      %v849 = vld [vmem:[%s567 + $0x8] sm:$0xff]
      %v850 = vld [vmem:[%s567 + $0x10] sm:$0xff]
      %v851 = vld [vmem:[%s567 + $0x18] sm:$0xff]
      %v853 = vsel %vm617, %v844, 0
      %v856 = vsel %vm617, %v845, 0
      %v859 = vsel %vm617, %v846, 0
      %v862 = vsel %vm617, %v847, 0
      %864 = vmatprep.subr.mxu0 0.0
      %865 = vmatpush1.msra.mxu0 %v848
      %866 = vmatprep.subr.mxu0 0.0
      %867 = vmatpush1.msra.mxu0 %v849
      %868 = vmatprep.subr.mxu0 0.0
      %869 = vmatpush1.msra.mxu0 %v850
      %870 = vmatprep.subr.mxu0 0.0
      %871 = vmatpush1.msra.mxu0 %v851
      %872 = vmatprep.subr.mxu0 0.0
      %873 = vmatpush1.msra.mxu0 0.0
      %874 = vmatprep.subr.mxu0 0.0
      %875 = vmatpush1.msra.mxu0 0.0
      %876 = vmatprep.subr.mxu0 0.0
      %877 = vmatpush1.msra.mxu0 0.0
      %878 = vmatprep.subr.mxu0 0.0
      %879 = vmatpush1.msra.mxu0 0.0
      %880 = vmatprep.subr.mxu0 0.0
      %881 = vmatpush1.msra.mxu0 0.0
      %882 = vmatprep.subr.mxu0 0.0
      %883 = vmatpush1.msra.mxu0 0.0
      %884 = vmatprep.subr.mxu0 0.0
      %885 = vmatpush1.msra.mxu0 0.0
      %886 = vmatprep.subr.mxu0 0.0
      %887 = vmatpush1.msra.mxu0 0.0
      %888 = vmatprep.subr.mxu0 0.0
      %889 = vmatpush1.msra.mxu0 0.0
      %890 = vmatprep.subr.mxu0 0.0
      %891 = vmatpush1.msra.mxu0 0.0
      %892 = vmatprep.subr.mxu0 0.0
      %893 = vmatpush1.msra.mxu0 0.0
      %894 = vmatprep.subr.mxu0 0.0
      %895 = vmatpush1.msra.mxu0 0.0
      %896 = vmatprep.subr.mxu0 0.0
      %897 = vmatpush1.msra.mxu0 0.0
      %898 = vmatprep.subr.mxu0 0.0
      %899 = vmatpush1.msra.mxu0 0.0
      %900 = vmatprep.subr.mxu0 0.0
      %901 = vmatpush1.msra.mxu0 0.0
      %902 = vmatprep.subr.mxu0 0.0
      %903 = vmatpush1.msra.mxu0 0.0
      %904 = vmatprep.subr.mxu0 0.0
      %905 = vmatpush1.msra.mxu0 0.0
      %906 = vmatprep.subr.mxu0 0.0
      %907 = vmatpush1.msra.mxu0 0.0
      %908 = vmatprep.subr.mxu0 0.0
      %909 = vmatpush1.msra.mxu0 0.0
      %910 = vmatprep.subr.mxu0 0.0
      %911 = vmatpush1.msra.mxu0 0.0
      %912 = vmatprep.subr.mxu0 0.0
      %913 = vmatpush1.msra.mxu0 0.0
      %914 = vmatprep.subr.mxu0 0.0
      %915 = vmatpush1.msra.mxu0 0.0
      %916 = vmatprep.subr.mxu0 0.0
      %917 = vmatpush1.msra.mxu0 0.0
      %918 = vmatprep.subr.mxu0 0.0
      %919 = vmatpush1.msra.mxu0 0.0
      %920 = vmatprep.subr.mxu0 0.0
      %921 = vmatpush1.msra.mxu0 0.0
      %922 = vmatprep.subr.mxu0 0.0
      %923 = vmatpush1.msra.mxu0 0.0
      %924 = vmatprep.subr.mxu0 0.0
      %925 = vmatpush1.msra.mxu0 0.0
      %926 = vmatprep.subr.mxu0 0.0
      %927 = vmatpush1.msra.mxu0 0.0
      %928 = vmatprep.mubr.f32.mxu0 0.0
      %929 = vmatmul.mubr.f32.gmra.mrb[0].mxu0 %v853
      %v930 = vpop.f32.mrb[0].mxu0
      %v931 = vadd.f32 0.0, %v930
      %v932 = vpop.f32.mrb[0].mxu0
      %933 = vmatprep.mubr.f32.mxu0 0.0
      %934 = vmatmul.mubr.f32.gmra.mrb[0].mxu0 %v856
      %v935 = vpop.f32.mrb[0].mxu0
      %v936 = vadd.f32 0.0, %v935
      %v937 = vpop.f32.mrb[0].mxu0
      %938 = vmatprep.mubr.f32.mxu0 0.0
      %939 = vmatmul.mubr.f32.gmra.mrb[0].mxu0 %v859
      %v940 = vpop.f32.mrb[0].mxu0
      %v941 = vadd.f32 0.0, %v940
      %v942 = vpop.f32.mrb[0].mxu0
      %943 = vmatprep.mubr.f32.mxu0 0.0
      %944 = vmatmul.mubr.f32.gmra.mrb[0].mxu0 %v862
      %v945 = vpop.f32.mrb[0].mxu0
      %v946 = vadd.f32 0.0, %v945
      %v947 = vpop.f32.mrb[0].mxu0
      %948 = vdwg.mxu0
      %v950 = vsel %vm617, %v840, 0
      %v953 = vsel %vm617, %v841, 0
      %v956 = vsel %vm617, %v842, 0
      %v959 = vsel %vm617, %v843, 0
      %961 = vmatprep.subr.mxu0 0.0
      %962 = vmatpush1.msra.mxu0 %v836
      %963 = vmatprep.subr.mxu0 0.0
      %964 = vmatpush1.msra.mxu0 %v837
      %965 = vmatprep.subr.mxu0 0.0
      %966 = vmatpush1.msra.mxu0 %v838
      %967 = vmatprep.subr.mxu0 0.0
      %968 = vmatpush1.msra.mxu0 %v839
      %969 = vmatprep.subr.mxu0 0.0
      %970 = vmatpush1.msra.mxu0 0.0
      %971 = vmatprep.subr.mxu0 0.0
      %972 = vmatpush1.msra.mxu0 0.0
      %973 = vmatprep.subr.mxu0 0.0
      %974 = vmatpush1.msra.mxu0 0.0
      %975 = vmatprep.subr.mxu0 0.0
      %976 = vmatpush1.msra.mxu0 0.0
      %977 = vmatprep.subr.mxu0 0.0
      %978 = vmatpush1.msra.mxu0 0.0
      %979 = vmatprep.subr.mxu0 0.0
      %980 = vmatpush1.msra.mxu0 0.0
      %981 = vmatprep.subr.mxu0 0.0
      %982 = vmatpush1.msra.mxu0 0.0
      %983 = vmatprep.subr.mxu0 0.0
      %984 = vmatpush1.msra.mxu0 0.0
      %985 = vmatprep.subr.mxu0 0.0
      %986 = vmatpush1.msra.mxu0 0.0
      %987 = vmatprep.subr.mxu0 0.0
      %988 = vmatpush1.msra.mxu0 0.0
      %989 = vmatprep.subr.mxu0 0.0
      %990 = vmatpush1.msra.mxu0 0.0
      %991 = vmatprep.subr.mxu0 0.0
      %992 = vmatpush1.msra.mxu0 0.0
      %993 = vmatprep.subr.mxu0 0.0
      %994 = vmatpush1.msra.mxu0 0.0
      %995 = vmatprep.subr.mxu0 0.0
      %996 = vmatpush1.msra.mxu0 0.0
      %997 = vmatprep.subr.mxu0 0.0
      %998 = vmatpush1.msra.mxu0 0.0
      %999 = vmatprep.subr.mxu0 0.0
      %1000 = vmatpush1.msra.mxu0 0.0
      %1001 = vmatprep.subr.mxu0 0.0
      %1002 = vmatpush1.msra.mxu0 0.0
      %1003 = vmatprep.subr.mxu0 0.0
      %1004 = vmatpush1.msra.mxu0 0.0
      %1005 = vmatprep.subr.mxu0 0.0
      %1006 = vmatpush1.msra.mxu0 0.0
      %1007 = vmatprep.subr.mxu0 0.0
      %1008 = vmatpush1.msra.mxu0 0.0
      %1009 = vmatprep.subr.mxu0 0.0
      %1010 = vmatpush1.msra.mxu0 0.0
      %1011 = vmatprep.subr.mxu0 0.0
      %1012 = vmatpush1.msra.mxu0 0.0
      %1013 = vmatprep.subr.mxu0 0.0
      %1014 = vmatpush1.msra.mxu0 0.0
      %1015 = vmatprep.subr.mxu0 0.0
      %1016 = vmatpush1.msra.mxu0 0.0
      %1017 = vmatprep.subr.mxu0 0.0
      %1018 = vmatpush1.msra.mxu0 0.0
      %1019 = vmatprep.subr.mxu0 0.0
      %1020 = vmatpush1.msra.mxu0 0.0
      %1021 = vmatprep.subr.mxu0 0.0
      %1022 = vmatpush1.msra.mxu0 0.0
      %1023 = vmatprep.subr.mxu0 0.0
      %1024 = vmatpush1.msra.mxu0 0.0
      %1025 = vmatprep.mubr.f32.mxu0 0.0
      %1026 = vmatmul.mubr.f32.gmra.mrb[0].mxu0 %v950
      %v1027 = vpop.f32.mrb[0].mxu0
      %v1028 = vadd.f32 %v931, %v1027
      %v1029 = vpop.f32.mrb[0].mxu0
      %1030 = vmatprep.mubr.f32.mxu0 0.0
      %1031 = vmatmul.mubr.f32.gmra.mrb[0].mxu0 %v953
      %v1032 = vpop.f32.mrb[0].mxu0
      %v1033 = vadd.f32 %v936, %v1032
      %v1034 = vpop.f32.mrb[0].mxu0
      %1035 = vmatprep.mubr.f32.mxu0 0.0
      %1036 = vmatmul.mubr.f32.gmra.mrb[0].mxu0 %v956
      %v1037 = vpop.f32.mrb[0].mxu0
      %v1038 = vadd.f32 %v941, %v1037
      %v1039 = vpop.f32.mrb[0].mxu0
      %1040 = vmatprep.mubr.f32.mxu0 0.0
      %1041 = vmatmul.mubr.f32.gmra.mrb[0].mxu0 %v959
      %v1042 = vpop.f32.mrb[0].mxu0
      %v1043 = vadd.f32 %v946, %v1042
      %v1044 = vpop.f32.mrb[0].mxu0
      %1045 = vdwg.mxu0
      %v1046 = vadd.f32 %v836, %v1028
      %v1047 = vadd.f32 %v837, %v1033
      %v1048 = vadd.f32 %v838, %v1038
      %v1049 = vadd.f32 %v839, %v1043
      %vm1050 = vcmask 523264
      %1051 = vst.msk [vmem:[%s587] sm:$0xff] %vm1050, %v1046
      %1052 = vst.msk [vmem:[%s587 + $0x8] sm:$0xff] %vm1050, %v1047
      %1053 = vst.msk [vmem:[%s587 + $0x10] sm:$0xff] %vm1050, %v1048
      %1054 = vst.msk [vmem:[%s587 + $0x18] sm:$0xff] %vm1050, %v1049
      %v1055 = vld [vmem:[%s572] sm:$0xff]
      %v1056 = vld [vmem:[%s572 + $0x8] sm:$0xff]
      %v1057 = vld [vmem:[%s572 + $0x10] sm:$0xff]
      %v1058 = vld [vmem:[%s572 + $0x18] sm:$0xff]
      %v1059 = vld [vmem:[%s10] sm:$0xff]
      %v1060 = vld [vmem:[%s10 + $0x8] sm:$0xff]
      %v1061 = vld [vmem:[%s10 + $0x10] sm:$0xff]
      %v1062 = vld [vmem:[%s10 + $0x18] sm:$0xff]
      %v1063 = vld [vmem:[%s11] sm:$0xff]
      %v1064 = vld [vmem:[%s11 + $0x8] sm:$0xff]
      %v1065 = vld [vmem:[%s11 + $0x10] sm:$0xff]
      %v1066 = vld [vmem:[%s11 + $0x18] sm:$0xff]
      %v1067 = vld [vmem:[%s577] sm:$0xff]
      %v1068 = vld [vmem:[%s577 + $0x8] sm:$0xff]
      %v1069 = vld [vmem:[%s577 + $0x10] sm:$0xff]
      %v1070 = vld [vmem:[%s577 + $0x18] sm:$0xff]
      %v1072 = vsel %vm617, %v1063, 0
      %v1075 = vsel %vm617, %v1064, 0
      %v1078 = vsel %vm617, %v1065, 0
      %v1081 = vsel %vm617, %v1066, 0
      %1083 = vmatprep.subr.mxu0 0.0
      %1084 = vmatpush1.msra.mxu0 %v1067
      %1085 = vmatprep.subr.mxu0 0.0
      %1086 = vmatpush1.msra.mxu0 %v1068
      %1087 = vmatprep.subr.mxu0 0.0
      %1088 = vmatpush1.msra.mxu0 %v1069
      %1089 = vmatprep.subr.mxu0 0.0
      %1090 = vmatpush1.msra.mxu0 %v1070
      %1091 = vmatprep.subr.mxu0 0.0
      %1092 = vmatpush1.msra.mxu0 0.0
      %1093 = vmatprep.subr.mxu0 0.0
      %1094 = vmatpush1.msra.mxu0 0.0
      %1095 = vmatprep.subr.mxu0 0.0
      %1096 = vmatpush1.msra.mxu0 0.0
      %1097 = vmatprep.subr.mxu0 0.0
      %1098 = vmatpush1.msra.mxu0 0.0
      %1099 = vmatprep.subr.mxu0 0.0
      %1100 = vmatpush1.msra.mxu0 0.0
      %1101 = vmatprep.subr.mxu0 0.0
      %1102 = vmatpush1.msra.mxu0 0.0
      %1103 = vmatprep.subr.mxu0 0.0
      %1104 = vmatpush1.msra.mxu0 0.0
      %1105 = vmatprep.subr.mxu0 0.0
      %1106 = vmatpush1.msra.mxu0 0.0
      %1107 = vmatprep.subr.mxu0 0.0
      %1108 = vmatpush1.msra.mxu0 0.0
      %1109 = vmatprep.subr.mxu0 0.0
      %1110 = vmatpush1.msra.mxu0 0.0
      %1111 = vmatprep.subr.mxu0 0.0
      %1112 = vmatpush1.msra.mxu0 0.0
      %1113 = vmatprep.subr.mxu0 0.0
      %1114 = vmatpush1.msra.mxu0 0.0
      %1115 = vmatprep.subr.mxu0 0.0
      %1116 = vmatpush1.msra.mxu0 0.0
      %1117 = vmatprep.subr.mxu0 0.0
      %1118 = vmatpush1.msra.mxu0 0.0
      %1119 = vmatprep.subr.mxu0 0.0
      %1120 = vmatpush1.msra.mxu0 0.0
      %1121 = vmatprep.subr.mxu0 0.0
      %1122 = vmatpush1.msra.mxu0 0.0
      %1123 = vmatprep.subr.mxu0 0.0
      %1124 = vmatpush1.msra.mxu0 0.0
      %1125 = vmatprep.subr.mxu0 0.0
      %1126 = vmatpush1.msra.mxu0 0.0
      %1127 = vmatprep.subr.mxu0 0.0
      %1128 = vmatpush1.msra.mxu0 0.0
      %1129 = vmatprep.subr.mxu0 0.0
      %1130 = vmatpush1.msra.mxu0 0.0
      %1131 = vmatprep.subr.mxu0 0.0
      %1132 = vmatpush1.msra.mxu0 0.0
      %1133 = vmatprep.subr.mxu0 0.0
      %1134 = vmatpush1.msra.mxu0 0.0
      %1135 = vmatprep.subr.mxu0 0.0
      %1136 = vmatpush1.msra.mxu0 0.0
      %1137 = vmatprep.subr.mxu0 0.0
      %1138 = vmatpush1.msra.mxu0 0.0
      %1139 = vmatprep.subr.mxu0 0.0
      %1140 = vmatpush1.msra.mxu0 0.0
      %1141 = vmatprep.subr.mxu0 0.0
      %1142 = vmatpush1.msra.mxu0 0.0
      %1143 = vmatprep.subr.mxu0 0.0
      %1144 = vmatpush1.msra.mxu0 0.0
      %1145 = vmatprep.subr.mxu0 0.0
      %1146 = vmatpush1.msra.mxu0 0.0
      %1147 = vmatprep.mubr.f32.mxu0 0.0
      %1148 = vmatmul.mubr.f32.gmra.mrb[0].mxu0 %v1072
      %v1149 = vpop.f32.mrb[0].mxu0
      %v1150 = vadd.f32 0.0, %v1149
      %v1151 = vpop.f32.mrb[0].mxu0
      %1152 = vmatprep.mubr.f32.mxu0 0.0
      %1153 = vmatmul.mubr.f32.gmra.mrb[0].mxu0 %v1075
      %v1154 = vpop.f32.mrb[0].mxu0
      %v1155 = vadd.f32 0.0, %v1154
      %v1156 = vpop.f32.mrb[0].mxu0
      %1157 = vmatprep.mubr.f32.mxu0 0.0
      %1158 = vmatmul.mubr.f32.gmra.mrb[0].mxu0 %v1078
      %v1159 = vpop.f32.mrb[0].mxu0
      %v1160 = vadd.f32 0.0, %v1159
      %v1161 = vpop.f32.mrb[0].mxu0
      %1162 = vmatprep.mubr.f32.mxu0 0.0
      %1163 = vmatmul.mubr.f32.gmra.mrb[0].mxu0 %v1081
      %v1164 = vpop.f32.mrb[0].mxu0
      %v1165 = vadd.f32 0.0, %v1164
      %v1166 = vpop.f32.mrb[0].mxu0
      %1167 = vdwg.mxu0
      %v1169 = vsel %vm617, %v1059, 0
      %v1172 = vsel %vm617, %v1060, 0
      %v1175 = vsel %vm617, %v1061, 0
      %v1178 = vsel %vm617, %v1062, 0
      %1180 = vmatprep.subr.mxu0 0.0
      %1181 = vmatpush1.msra.mxu0 %v1055
      %1182 = vmatprep.subr.mxu0 0.0
      %1183 = vmatpush1.msra.mxu0 %v1056
      %1184 = vmatprep.subr.mxu0 0.0
      %1185 = vmatpush1.msra.mxu0 %v1057
      %1186 = vmatprep.subr.mxu0 0.0
      %1187 = vmatpush1.msra.mxu0 %v1058
      %1188 = vmatprep.subr.mxu0 0.0
      %1189 = vmatpush1.msra.mxu0 0.0
      %1190 = vmatprep.subr.mxu0 0.0
      %1191 = vmatpush1.msra.mxu0 0.0
      %1192 = vmatprep.subr.mxu0 0.0
      %1193 = vmatpush1.msra.mxu0 0.0
      %1194 = vmatprep.subr.mxu0 0.0
      %1195 = vmatpush1.msra.mxu0 0.0
      %1196 = vmatprep.subr.mxu0 0.0
      %1197 = vmatpush1.msra.mxu0 0.0
      %1198 = vmatprep.subr.mxu0 0.0
      %1199 = vmatpush1.msra.mxu0 0.0
      %1200 = vmatprep.subr.mxu0 0.0
      %1201 = vmatpush1.msra.mxu0 0.0
      %1202 = vmatprep.subr.mxu0 0.0
      %1203 = vmatpush1.msra.mxu0 0.0
      %1204 = vmatprep.subr.mxu0 0.0
      %1205 = vmatpush1.msra.mxu0 0.0
      %1206 = vmatprep.subr.mxu0 0.0
      %1207 = vmatpush1.msra.mxu0 0.0
      %1208 = vmatprep.subr.mxu0 0.0
      %1209 = vmatpush1.msra.mxu0 0.0
      %1210 = vmatprep.subr.mxu0 0.0
      %1211 = vmatpush1.msra.mxu0 0.0
      %1212 = vmatprep.subr.mxu0 0.0
      %1213 = vmatpush1.msra.mxu0 0.0
      %1214 = vmatprep.subr.mxu0 0.0
      %1215 = vmatpush1.msra.mxu0 0.0
      %1216 = vmatprep.subr.mxu0 0.0
      %1217 = vmatpush1.msra.mxu0 0.0
      %1218 = vmatprep.subr.mxu0 0.0
      %1219 = vmatpush1.msra.mxu0 0.0
      %1220 = vmatprep.subr.mxu0 0.0
      %1221 = vmatpush1.msra.mxu0 0.0
      %1222 = vmatprep.subr.mxu0 0.0
      %1223 = vmatpush1.msra.mxu0 0.0
      %1224 = vmatprep.subr.mxu0 0.0
      %1225 = vmatpush1.msra.mxu0 0.0
      %1226 = vmatprep.subr.mxu0 0.0
      %1227 = vmatpush1.msra.mxu0 0.0
      %1228 = vmatprep.subr.mxu0 0.0
      %1229 = vmatpush1.msra.mxu0 0.0
      %1230 = vmatprep.subr.mxu0 0.0
      %1231 = vmatpush1.msra.mxu0 0.0
      %1232 = vmatprep.subr.mxu0 0.0
      %1233 = vmatpush1.msra.mxu0 0.0
      %1234 = vmatprep.subr.mxu0 0.0
      %1235 = vmatpush1.msra.mxu0 0.0
      %1236 = vmatprep.subr.mxu0 0.0
      %1237 = vmatpush1.msra.mxu0 0.0
      %1238 = vmatprep.subr.mxu0 0.0
      %1239 = vmatpush1.msra.mxu0 0.0
      %1240 = vmatprep.subr.mxu0 0.0
      %1241 = vmatpush1.msra.mxu0 0.0
      %1242 = vmatprep.subr.mxu0 0.0
      %1243 = vmatpush1.msra.mxu0 0.0
      %1244 = vmatprep.mubr.f32.mxu0 0.0
      %1245 = vmatmul.mubr.f32.gmra.mrb[0].mxu0 %v1169
      %v1246 = vpop.f32.mrb[0].mxu0
      %v1247 = vadd.f32 %v1150, %v1246
      %v1248 = vpop.f32.mrb[0].mxu0
      %1249 = vmatprep.mubr.f32.mxu0 0.0
      %1250 = vmatmul.mubr.f32.gmra.mrb[0].mxu0 %v1172
      %v1251 = vpop.f32.mrb[0].mxu0
      %v1252 = vadd.f32 %v1155, %v1251
      %v1253 = vpop.f32.mrb[0].mxu0
      %1254 = vmatprep.mubr.f32.mxu0 0.0
      %1255 = vmatmul.mubr.f32.gmra.mrb[0].mxu0 %v1175
      %v1256 = vpop.f32.mrb[0].mxu0
      %v1257 = vadd.f32 %v1160, %v1256
      %v1258 = vpop.f32.mrb[0].mxu0
      %1259 = vmatprep.mubr.f32.mxu0 0.0
      %1260 = vmatmul.mubr.f32.gmra.mrb[0].mxu0 %v1178
      %v1261 = vpop.f32.mrb[0].mxu0
      %v1262 = vadd.f32 %v1165, %v1261
      %v1263 = vpop.f32.mrb[0].mxu0
      %1264 = vdwg.mxu0
      %v1265 = vadd.f32 %v1055, %v1247
      %v1266 = vadd.f32 %v1056, %v1252
      %v1267 = vadd.f32 %v1057, %v1257
      %v1268 = vadd.f32 %v1058, %v1262
      %vm1269 = vcmask 130048
      %1270 = vst.msk [vmem:[%s592] sm:$0xff] %vm1269, %v1265
      %1271 = vst.msk [vmem:[%s592 + $0x8] sm:$0xff] %vm1269, %v1266
      %1272 = vst.msk [vmem:[%s592 + $0x10] sm:$0xff] %vm1269, %v1267
      %1273 = vst.msk [vmem:[%s592 + $0x18] sm:$0xff] %vm1269, %v1268
      %p1274 = scmp.lt.s32.totalorder %s26, 1
      %s1275 = scalar_select %p1274, %s26, 1
      %s1276 = smul.addr %s1275, 8
      %s1277 = smul.addr %s1276, 8
      %s1278 = scalar_lea.vmem %s12, %s1277
      %p1279 = scmp.lt.s32.totalorder %s26, 1
      %s1280 = scalar_select %p1279, %s26, 1
      %s1281 = smul.addr %s1280, 4
      %s1282 = smul.addr %s1281, 8
      %s1283 = scalar_lea.vmem %s13, %s1282
      %p1284 = scmp.lt.s32.totalorder %s26, 1
      %s1285 = scalar_select %p1284, %s26, 1
      %s1286 = smul.addr %s1285, 4
      %s1287 = smul.addr %s1286, 8
      %s1288 = scalar_lea.vmem %s14, %s1287
      // Predicated region
      $region69: #{gradient_induced_transition_fwd.1} parent=67 // pred_check
        %p1289 = pneg %p326
      $region70: #{gradient_induced_transition_fwd.1} parent=67 // pred_check_branch
        %1291 = sbr.rel (%p1289) target = $region72
      $region71: #{gradient_induced_transition_fwd.1} parent=67 // pred_region
        _
      $region72: #{gradient_induced_transition_fwd.1} parent=67 // pred_fallthru
        _
      // Predicated region
      $region73: #{gradient_induced_transition_fwd.1} parent=67 // pred_check
        %p1292 = pneg %p352
      $region74: #{gradient_induced_transition_fwd.1} parent=67 // pred_check_branch
        %1294 = sbr.rel (%p1292) target = $region76
      $region75: #{gradient_induced_transition_fwd.1} parent=67 // pred_region
        _
      $region76: #{gradient_induced_transition_fwd.1} parent=67 // pred_fallthru
        _
      // Predicated region
      $region77: #{gradient_induced_transition_fwd.1} parent=67 // pred_check
        %p1295 = pneg %p378
      $region78: #{gradient_induced_transition_fwd.1} parent=67 // pred_check_branch
        %1297 = sbr.rel (%p1295) target = $region80
      $region79: #{gradient_induced_transition_fwd.1} parent=67 // pred_region
        _
      $region80: #{gradient_induced_transition_fwd.1} parent=67 // pred_fallthru
        _
    $region68: #{gradient_induced_transition_fwd.1} parent=5 // pred_fallthru
      _
    %p1298 = scmp.le.s32.totalorder 2, %s21
    // Predicated region
    $region81: #{gradient_induced_transition_fwd.1} parent=5 // pred_check
      %p1299 = pneg %p1298
    $region82: #{gradient_induced_transition_fwd.1} parent=5 // pred_check_branch
      %1301 = sbr.rel (%p1299) target = $region84
    $region83: #{gradient_induced_transition_fwd.1} parent=5 // pred_region
      %s1302 = ssub.s32 %s21, 2
      // Predicated region
      $region85: #{gradient_induced_transition_fwd.1} parent=83 // pred_check
        %p1303 = pneg %p332
      $region86: #{gradient_induced_transition_fwd.1} parent=83 // pred_check_branch
        %1305 = sbr.rel (%p1303) target = $region88
      $region87: #{gradient_induced_transition_fwd.1} parent=83 // pred_region
        %p1306 = scmp.lt.s32.totalorder %s27, 1
        %s1307 = scalar_select %p1306, %s27, 1
        %s1308 = smul.addr %s1307, 8
        %s1309 = smul.addr %s1308, 8
        %s1310 = scalar_lea.vmem %s12, %s1309
      $region88: #{gradient_induced_transition_fwd.1} parent=83 // pred_fallthru
        _
      // Predicated region
      $region89: #{gradient_induced_transition_fwd.1} parent=83 // pred_check
        %p1311 = pneg %p358
      $region90: #{gradient_induced_transition_fwd.1} parent=83 // pred_check_branch
        %1313 = sbr.rel (%p1311) target = $region92
      $region91: #{gradient_induced_transition_fwd.1} parent=83 // pred_region
        %p1314 = scmp.lt.s32.totalorder %s27, 1
        %s1315 = scalar_select %p1314, %s27, 1
        %s1316 = smul.addr %s1315, 4
        %s1317 = smul.addr %s1316, 8
        %s1318 = scalar_lea.vmem %s13, %s1317
      $region92: #{gradient_induced_transition_fwd.1} parent=83 // pred_fallthru
        _
      // Predicated region
      $region93: #{gradient_induced_transition_fwd.1} parent=83 // pred_check
        %p1319 = pneg %p384
      $region94: #{gradient_induced_transition_fwd.1} parent=83 // pred_check_branch
        %1321 = sbr.rel (%p1319) target = $region96
      $region95: #{gradient_induced_transition_fwd.1} parent=83 // pred_region
        %p1322 = scmp.lt.s32.totalorder %s27, 1
        %s1323 = scalar_select %p1322, %s27, 1
        %s1324 = smul.addr %s1323, 4
        %s1325 = smul.addr %s1324, 8
        %s1326 = scalar_lea.vmem %s14, %s1325
      $region96: #{gradient_induced_transition_fwd.1} parent=83 // pred_fallthru
        _
    $region84: #{gradient_induced_transition_fwd.1} parent=5 // pred_fallthru
      _
  $region6: #{gradient_induced_transition_fwd.1} parent=0 // loop_footer
    %s25 = sadd.s32 1, %s21
  $region7: #{gradient_induced_transition_fwd.1} parent=0 // loop_footer_branch
    %20 = sbr.rel target = $region3
  $region8: #{gradient_induced_transition_fwd.1} parent=0 // loop_exit
    _

</llo_original>
